<compile_context>
chip_gen: v5e
topology: v5e:2x2
jax: 0.10.0
libtpu: 0.0.40
codegen_flags: <defaults>
</compile_context>

<pallas_src>
import math
from functools import partial

import jax
import jax.numpy as jnp
from jax import lax
from jax.experimental import pallas as pl
from jax.experimental.pallas import tpu as pltpu  # noqa: F401  (kept for TPU-specific tweaks)

# ---------------- config (small, consistent with the module) ----------------
VOCAB = 128
MAX_POS = 32
HIDDEN = 32
NUM_HEADS = 4
HEAD_DIM = HIDDEN // NUM_HEADS
NUM_LAYERS = 2
INNER = 4 * HIDDEN
EPS = 1e-5
GELU_C = math.sqrt(2.0 / math.pi)
LANE = 128

# weight-slab layout: per layer [attn_w(D rows) | proj_w(D) | fc_w(D) | mproj_w(INNER)]
W_ROWS_PER_LAYER = 3 * HIDDEN + INNER            # 224
# param-slab layout: per layer 8 rows, then lnf_g / lnf_b
P_ROWS_PER_LAYER = 8


# ----------------------------- in-kernel helpers ------------------------------
def _layernorm(x, g, b):
    mu = jnp.mean(x, axis=-1, keepdims=True)
    xc = x - mu
    var = jnp.mean(xc * xc, axis=-1, keepdims=True)
    return xc * lax.rsqrt(var + EPS) * g + b


def _gelu_new(x):
    # NewGELUActivation: 0.5*x*(1+tanh(sqrt(2/pi)*(x+0.044715*x^3)))
    return 0.5 * x * (1.0 + jnp.tanh(GELU_C * (x + 0.044715 * (x * x * x))))


def _bf(a):
    # bf16 strictly at MXU operands; accumulation stays f32.
    return a.astype(jnp.bfloat16)


# ----------------------------- fused Pallas kernel ----------------------------
def _gpt_fused_kernel(x_ref, w_ref, p_ref, logits_ref, hidden_ref, *, batch, seq):
    B, S = batch, seq
    T = B * S
    D, H, Dh, I, V = HIDDEN, NUM_HEADS, HEAD_DIM, INNER, VOCAB
    HB = H * B

    # Additive causal bias, computed once (shared by all layers / heads).
    row = lax.broadcasted_iota(jnp.int32, (S, S), 0)
    col = lax.broadcasted_iota(jnp.int32, (S, S), 1)
    causal_bias = jnp.where(col <= row, 0.0, -1e30).astype(jnp.float32)   # (S, S)

    def pvec(r, n):                       # (1, n) f32 parameter row from the f32 slab
        return p_ref[r:r + 1, :n]

    x = x_ref[...]                        # (T, D) f32, resident in VMEM throughout

    for l in range(NUM_LAYERS):           # static unroll (L = 2)
        wb = l * W_ROWS_PER_LAYER
        attn_w = w_ref[wb:wb + D, :3 * D]                       # (D, 3D)  bf16
        proj_w = w_ref[wb + D:wb + 2 * D, :D]                   # (D, D)   bf16
        fc_w = w_ref[wb + 2 * D:wb + 3 * D, :I]                 # (D, I)   bf16
        mproj_w = w_ref[wb + 3 * D:wb + 3 * D + I, :D]          # (I, D)   bf16

        pb = l * P_ROWS_PER_LAYER
        ln1_g, ln1_b = pvec(pb + 0, D), pvec(pb + 1, D)
        attn_b, proj_b = pvec(pb + 2, 3 * D), pvec(pb + 3, D)
        ln2_g, ln2_b = pvec(pb + 4, D), pvec(pb + 5, D)
        fc_b, mproj_b = pvec(pb + 6, I), pvec(pb + 7, D)

        # ---------------- attention sub-block ----------------
        hn = _layernorm(x, ln1_g, ln1_b)
        qkv = jnp.dot(_bf(hn), attn_w,
                      preferred_element_type=jnp.float32) + attn_b        # (T, 3D) f32
        qkv3 = qkv.reshape(B, S, 3 * D)

        def heads(off):
            # Pack heads into the batch dim: (H*B, S, Dh), batch index n = h*B + b.
            return jnp.concatenate(
                [qkv3[:, :, off + h * Dh: off + (h + 1) * Dh] for h in range(H)],
                axis=0)

        q = heads(0)            # scale 1/sqrt(Dh) already folded into the q weights
        k = heads(D)
        v = heads(2 * D)

        # One batched score matmul + one softmax + one batched p@v for ALL heads.
        s = jnp.einsum('nqd,nkd->nqk', _bf(q), _bf(k),
                       preferred_element_type=jnp.float32)                # (HB, S, S)
        s = s + causal_bias
        s = s - jnp.max(s, axis=-1, keepdims=True)
        p = jnp.exp(s)
        p = p / jnp.sum(p, axis=-1, keepdims=True)                        # exact divide
        o = jnp.einsum('nqk,nkd->nqd', _bf(p), _bf(v),
                       preferred_element_type=jnp.float32)                # (HB, S, Dh)

        attn = jnp.concatenate([o[h * B:(h + 1) * B] for h in range(H)],
                               axis=-1).reshape(T, D)                     # (T, D)

        x = x + jnp.dot(_bf(attn), proj_w,
                        preferred_element_type=jnp.float32) + proj_b

        # ---------------- MLP sub-block ----------------
        hn = _layernorm(x, ln2_g, ln2_b)
        m = _gelu_new(jnp.dot(_bf(hn), fc_w,
                              preferred_element_type=jnp.float32) + fc_b)
        x = x + jnp.dot(_bf(m), mproj_w,
                        preferred_element_type=jnp.float32) + mproj_b

    # ---------------- final LN + lm_head (no bias), lane-dense outputs ----------
    pb = NUM_LAYERS * P_ROWS_PER_LAYER
    x = _layernorm(x, pvec(pb + 0, D), pvec(pb + 1, D))
    lm_w = w_ref[NUM_LAYERS * W_ROWS_PER_LAYER:
                 NUM_LAYERS * W_ROWS_PER_LAYER + D, :V]                   # (D, V) bf16
    logits_ref[...] = jnp.dot(_bf(x), lm_w, preferred_element_type=jnp.float32)
    hidden_ref[...] = jnp.concatenate(
        [x, jnp.zeros((T, LANE - D), jnp.float32)], axis=-1)              # lane-dense store


def _full_spec(shape):
    return pl.BlockSpec(shape, lambda: (0,) * len(shape))


# ------------------------------ parameter init --------------------------------
def init_params(key):
    def normal(k, shape, std=0.02):
        return std * jax.random.normal(k, shape, dtype=jnp.float32)

    keys = jax.random.split(key, 7)
    L, D = NUM_LAYERS, HIDDEN
    return {
        "wte": jax.random.normal(keys[0], (VOCAB, D), dtype=jnp.float32),
        "wpe": jax.random.normal(keys[1], (MAX_POS, D), dtype=jnp.float32),
        # per-layer weights stacked along a leading layer axis (Conv1D: (in, out))
        "ln1_g": jnp.ones((L, D), jnp.float32),
        "ln1_b": jnp.zeros((L, D), jnp.float32),
        "attn_w": normal(keys[2], (L, D, 3 * D)),
        "attn_b": jnp.zeros((L, 3 * D), jnp.float32),
        "proj_w": normal(keys[3], (L, D, D)),
        "proj_b": jnp.zeros((L, D), jnp.float32),
        "ln2_g": jnp.ones((L, D), jnp.float32),
        "ln2_b": jnp.zeros((L, D), jnp.float32),
        "fc_w": normal(keys[4], (L, D, INNER)),
        "fc_b": jnp.zeros((L, INNER), jnp.float32),
        "mproj_w": normal(keys[5], (L, INNER, D)),
        "mproj_b": jnp.zeros((L, D), jnp.float32),
        # final LN + lm_head (Linear(n_embd, vocab, bias=False), stored (D, V))
        "lnf_g": jnp.ones((D,), jnp.float32),
        "lnf_b": jnp.zeros((D,), jnp.float32),
        "lm_w": normal(keys[6], (D, VOCAB)),
    }


# --------------------------- weight / param packing ----------------------------
def _pad_lanes_2d(w):
    r, c = w.shape
    return jnp.pad(w, ((0, 0), (0, LANE - c)))


def _param_row(v):
    v = jnp.asarray(v, jnp.float32).reshape(-1)
    return jnp.pad(v, (0, LANE - v.shape[0]))[None, :]


def pack_params(params):
    """Pack all weights into one bf16 slab and all LN params / biases into one
    f32 slab (both lane-dense, last dim = 128).  Folds 1/sqrt(head_dim) into
    the q columns of c_attn (weight + bias) — mathematically equivalent."""
    D, L = HIDDEN, NUM_LAYERS
    scale = 1.0 / math.sqrt(HEAD_DIM)
    wrows, prows = [], []
    for l in range(L):
        attn_w = params["attn_w"][l].at[:, :D].multiply(scale)
        attn_b = params["attn_b"][l].at[:D].multiply(scale)
        wrows += [_pad_lanes_2d(attn_w),
                  _pad_lanes_2d(params["proj_w"][l]),
                  _pad_lanes_2d(params["fc_w"][l]),
                  _pad_lanes_2d(params["mproj_w"][l])]
        prows += [_param_row(params["ln1_g"][l]), _param_row(params["ln1_b"][l]),
                  _param_row(attn_b), _param_row(params["proj_b"][l]),
                  _param_row(params["ln2_g"][l]), _param_row(params["ln2_b"][l]),
                  _param_row(params["fc_b"][l]), _param_row(params["mproj_b"][l])]
    wrows.append(_pad_lanes_2d(params["lm_w"]))
    prows += [_param_row(params["lnf_g"]), _param_row(params["lnf_b"])]

    wslab = jnp.concatenate(wrows, axis=0).astype(jnp.bfloat16)   # (480, 128) bf16
    pslab = jnp.concatenate(prows, axis=0).astype(jnp.float32)    # (18, 128)  f32
    pad = (-pslab.shape[0]) % 8
    if pad:
        pslab = jnp.pad(pslab, ((0, pad), (0, 0)))                # (24, 128)
    return {"wte": params["wte"], "wpe": params["wpe"],
            "wslab": wslab, "pslab": pslab}


# ------------------------------- forward pass ---------------------------------
def gpt_forward(packed, input_ids):
    B, S = input_ids.shape
    D, V = HIDDEN, VOCAB
    T = B * S

    # Embedding gathers (plain-JAX glue); drop(.) == identity at inference.
    tok = jnp.take(packed["wte"], input_ids, axis=0)          # (B, S, D)
    pos = packed["wpe"][:S][None, :, :]                        # (1, S, D)
    x0 = (tok + pos).reshape(T, D).astype(jnp.float32)

    wslab, pslab = packed["wslab"], packed["pslab"]

    logits, hidden_pad = pl.pallas_call(
        partial(_gpt_fused_kernel, batch=B, seq=S),
        out_shape=(jax.ShapeDtypeStruct((T, V), jnp.float32),
                   jax.ShapeDtypeStruct((T, LANE), jnp.float32)),
        in_specs=[_full_spec(x0.shape),
                  _full_spec(wslab.shape),
                  _full_spec(pslab.shape)],
        out_specs=(_full_spec((T, V)), _full_spec((T, LANE))),
    )(x0, wslab, pslab)

    hidden = hidden_pad[:, :D]
    return logits.reshape(B, S, V), hidden.reshape(B, S, D)


# ----------------------------------- main --------------------------------------
if __name__ == "__main__":
    key = jax.random.PRNGKey(0)
    pkey, ikey = jax.random.split(key)
    params = init_params(pkey)
    packed = pack_params(params)

    B, S = 2, 8
    input_ids = jax.random.randint(ikey, (B, S), 0, VOCAB, dtype=jnp.int32)

    fwd = jax.jit(gpt_forward)
    lm_logits, hidden_states = fwd(packed, input_ids)
    jax.block_until_ready((lm_logits, hidden_states))

    assert lm_logits.shape == (B, S, VOCAB)
    assert hidden_states.shape == (B, S, HIDDEN)
    assert bool(jnp.all(jnp.isfinite(lm_logits)))
    assert bool(jnp.all(jnp.isfinite(hidden_states)))
    print("KERNEL_OK")
</pallas_src>

<mosaic_0001>
module attributes {stable_mosaic.version = 11 : i64} {
  func.func @_gpt_fused_kernel(%arg0: memref<16x32xf32, #tpu.memory_space<vmem>>, %arg1: memref<480x128xbf16, #tpu.memory_space<vmem>>, %arg2: memref<24x128xf32, #tpu.memory_space<vmem>>, %arg3: memref<16x128xf32, #tpu.memory_space<vmem>>, %arg4: memref<16x128xf32, #tpu.memory_space<vmem>>) attributes {dimension_semantics = [], scalar_prefetch = 0 : i64, scratch_operands = 0 : i64, tpu.core_type = #tpu.core_type<tc>} {
    %0 = tpu.iota {dimensions = array<i32: 0>} : vector<8x8xi32>
    %1 = tpu.iota {dimensions = array<i32: 1>} : vector<8x8xi32>
    %2 = arith.cmpi sle, %1, %0 : vector<8x8xi32>
    %cst = arith.constant 0.000000e+00 : f32
    %cst_0 = arith.constant -1.000000e+30 : f32
    %3 = vector.broadcast %cst : f32 to vector<8x8xf32>
    %4 = vector.broadcast %cst_0 : f32 to vector<8x8xf32>
    %5 = arith.select %2, %3, %4 : vector<8x8xi1>, vector<8x8xf32>
    %c0 = arith.constant 0 : index
    %c0_1 = arith.constant 0 : index
    %6 = vector.load %arg0[%c0, %c0_1] : memref<16x32xf32, #tpu.memory_space<vmem>>, vector<16x32xf32>
    %c0_2 = arith.constant 0 : index
    %c0_3 = arith.constant 0 : index
    %7 = vector.load %arg1[%c0_2, %c0_3] : memref<480x128xbf16, #tpu.memory_space<vmem>>, vector<32x96xbf16>
    %c32 = arith.constant 32 : index
    %c0_4 = arith.constant 0 : index
    %8 = vector.load %arg1[%c32, %c0_4] : memref<480x128xbf16, #tpu.memory_space<vmem>>, vector<32x32xbf16>
    %c64 = arith.constant 64 : index
    %c0_5 = arith.constant 0 : index
    %9 = vector.load %arg1[%c64, %c0_5] : memref<480x128xbf16, #tpu.memory_space<vmem>>, vector<32x128xbf16>
    %c96 = arith.constant 96 : index
    %c0_6 = arith.constant 0 : index
    %10 = vector.load %arg1[%c96, %c0_6] : memref<480x128xbf16, #tpu.memory_space<vmem>>, vector<128x32xbf16>
    %c0_7 = arith.constant 0 : index
    %c0_8 = arith.constant 0 : index
    %11 = vector.load %arg2[%c0_7, %c0_8] : memref<24x128xf32, #tpu.memory_space<vmem>>, vector<1x32xf32>
    %c1 = arith.constant 1 : index
    %c0_9 = arith.constant 0 : index
    %12 = vector.load %arg2[%c1, %c0_9] : memref<24x128xf32, #tpu.memory_space<vmem>>, vector<1x32xf32>
    %c2 = arith.constant 2 : index
    %c0_10 = arith.constant 0 : index
    %13 = vector.load %arg2[%c2, %c0_10] : memref<24x128xf32, #tpu.memory_space<vmem>>, vector<1x96xf32>
    %c3 = arith.constant 3 : index
    %c0_11 = arith.constant 0 : index
    %14 = vector.load %arg2[%c3, %c0_11] : memref<24x128xf32, #tpu.memory_space<vmem>>, vector<1x32xf32>
    %c4 = arith.constant 4 : index
    %c0_12 = arith.constant 0 : index
    %15 = vector.load %arg2[%c4, %c0_12] : memref<24x128xf32, #tpu.memory_space<vmem>>, vector<1x32xf32>
    %c5 = arith.constant 5 : index
    %c0_13 = arith.constant 0 : index
    %16 = vector.load %arg2[%c5, %c0_13] : memref<24x128xf32, #tpu.memory_space<vmem>>, vector<1x32xf32>
    %c6 = arith.constant 6 : index
    %c0_14 = arith.constant 0 : index
    %17 = vector.load %arg2[%c6, %c0_14] : memref<24x128xf32, #tpu.memory_space<vmem>>, vector<1x128xf32>
    %c7 = arith.constant 7 : index
    %c0_15 = arith.constant 0 : index
    %18 = vector.load %arg2[%c7, %c0_15] : memref<24x128xf32, #tpu.memory_space<vmem>>, vector<1x32xf32>
    %cst_16 = arith.constant dense<0.000000e+00> : vector<16xf32>
    %19 = vector.multi_reduction <add>, %6, %cst_16 [1] : vector<16x32xf32> to vector<16xf32>
    %20 = vector.shape_cast %19 : vector<16xf32> to vector<16x1xf32>
    %cst_17 = arith.constant 3.200000e+01 : f32
    %21 = vector.broadcast %cst_17 : f32 to vector<16x1xf32>
    %22 = arith.divf %20, %21 : vector<16x1xf32>
    %23 = vector.broadcast %22 : vector<16x1xf32> to vector<16x32xf32>
    %24 = arith.subf %6, %23 : vector<16x32xf32>
    %25 = arith.mulf %24, %24 : vector<16x32xf32>
    %cst_18 = arith.constant dense<0.000000e+00> : vector<16xf32>
    %26 = vector.multi_reduction <add>, %25, %cst_18 [1] : vector<16x32xf32> to vector<16xf32>
    %27 = vector.shape_cast %26 : vector<16xf32> to vector<16x1xf32>
    %cst_19 = arith.constant 3.200000e+01 : f32
    %28 = vector.broadcast %cst_19 : f32 to vector<16x1xf32>
    %29 = arith.divf %27, %28 : vector<16x1xf32>
    %cst_20 = arith.constant 9.99999974E-6 : f32
    %30 = vector.broadcast %cst_20 : f32 to vector<16x1xf32>
    %31 = arith.addf %29, %30 : vector<16x1xf32>
    %32 = math.rsqrt %31 : vector<16x1xf32>
    %33 = vector.broadcast %32 : vector<16x1xf32> to vector<16x32xf32>
    %34 = arith.mulf %24, %33 : vector<16x32xf32>
    %35 = vector.broadcast %11 : vector<1x32xf32> to vector<16x32xf32>
    %36 = arith.mulf %34, %35 : vector<16x32xf32>
    %37 = vector.broadcast %12 : vector<1x32xf32> to vector<16x32xf32>
    %38 = arith.addf %36, %37 : vector<16x32xf32>
    %39 = arith.truncf %38 : vector<16x32xf32> to vector<16x32xbf16>
    %cst_21 = arith.constant dense<0.000000e+00> : vector<16x96xf32>
    %40 = tpu.matmul %39, %7, %cst_21 {dimension_numbers = #tpu.dot_dimension_numbers<[1], [0], [0], [1], [0, 0, 1, 1], [], []>} : vector<16x32xbf16>, vector<32x96xbf16>, vector<16x96xf32> -> vector<16x96xf32>
    %41 = vector.broadcast %13 : vector<1x96xf32> to vector<16x96xf32>
    %42 = arith.addf %40, %41 : vector<16x96xf32>
    %43 = vector.shape_cast %42 : vector<16x96xf32> to vector<2x8x96xf32>
    %44 = vector.extract_strided_slice %43 {offsets = [0, 0, 0], sizes = [2, 8, 8], strides = [1, 1, 1]} : vector<2x8x96xf32> to vector<2x8x8xf32>
    %45 = vector.extract_strided_slice %43 {offsets = [0, 0, 8], sizes = [2, 8, 8], strides = [1, 1, 1]} : vector<2x8x96xf32> to vector<2x8x8xf32>
    %46 = vector.extract_strided_slice %43 {offsets = [0, 0, 16], sizes = [2, 8, 8], strides = [1, 1, 1]} : vector<2x8x96xf32> to vector<2x8x8xf32>
    %47 = vector.extract_strided_slice %43 {offsets = [0, 0, 24], sizes = [2, 8, 8], strides = [1, 1, 1]} : vector<2x8x96xf32> to vector<2x8x8xf32>
    %48 = tpu.concatenate %44, %45, %46, %47 in 0 : vector<2x8x8xf32>, vector<2x8x8xf32>, vector<2x8x8xf32>, vector<2x8x8xf32> -> vector<8x8x8xf32>
    %49 = vector.extract_strided_slice %43 {offsets = [0, 0, 32], sizes = [2, 8, 8], strides = [1, 1, 1]} : vector<2x8x96xf32> to vector<2x8x8xf32>
    %50 = vector.extract_strided_slice %43 {offsets = [0, 0, 40], sizes = [2, 8, 8], strides = [1, 1, 1]} : vector<2x8x96xf32> to vector<2x8x8xf32>
    %51 = vector.extract_strided_slice %43 {offsets = [0, 0, 48], sizes = [2, 8, 8], strides = [1, 1, 1]} : vector<2x8x96xf32> to vector<2x8x8xf32>
    %52 = vector.extract_strided_slice %43 {offsets = [0, 0, 56], sizes = [2, 8, 8], strides = [1, 1, 1]} : vector<2x8x96xf32> to vector<2x8x8xf32>
    %53 = tpu.concatenate %49, %50, %51, %52 in 0 : vector<2x8x8xf32>, vector<2x8x8xf32>, vector<2x8x8xf32>, vector<2x8x8xf32> -> vector<8x8x8xf32>
    %54 = vector.extract_strided_slice %43 {offsets = [0, 0, 64], sizes = [2, 8, 8], strides = [1, 1, 1]} : vector<2x8x96xf32> to vector<2x8x8xf32>
    %55 = vector.extract_strided_slice %43 {offsets = [0, 0, 72], sizes = [2, 8, 8], strides = [1, 1, 1]} : vector<2x8x96xf32> to vector<2x8x8xf32>
    %56 = vector.extract_strided_slice %43 {offsets = [0, 0, 80], sizes = [2, 8, 8], strides = [1, 1, 1]} : vector<2x8x96xf32> to vector<2x8x8xf32>
    %57 = vector.extract_strided_slice %43 {offsets = [0, 0, 88], sizes = [2, 8, 8], strides = [1, 1, 1]} : vector<2x8x96xf32> to vector<2x8x8xf32>
    %58 = tpu.concatenate %54, %55, %56, %57 in 0 : vector<2x8x8xf32>, vector<2x8x8xf32>, vector<2x8x8xf32>, vector<2x8x8xf32> -> vector<8x8x8xf32>
    %59 = arith.truncf %48 : vector<8x8x8xf32> to vector<8x8x8xbf16>
    %60 = arith.truncf %53 : vector<8x8x8xf32> to vector<8x8x8xbf16>
    "tpu.trace_start"() <{level = 10 : i32, message = "nqd,nkd->nqk"}> : () -> ()
    %cst_22 = arith.constant dense<0.000000e+00> : vector<8x8x8xf32>
    %61 = tpu.matmul %59, %60, %cst_22 {dimension_numbers = #tpu.dot_dimension_numbers<[2], [2], [1], [1], [0, 0, 0, 1, 1, 1], [0], [0]>} : vector<8x8x8xbf16>, vector<8x8x8xbf16>, vector<8x8x8xf32> -> vector<8x8x8xf32>
    "tpu.trace_stop"() : () -> ()
    %62 = vector.shape_cast %5 : vector<8x8xf32> to vector<1x8x8xf32>
    %63 = vector.broadcast %62 : vector<1x8x8xf32> to vector<8x8x8xf32>
    %64 = arith.addf %61, %63 : vector<8x8x8xf32>
    %cst_23 = arith.constant dense<0xFF800000> : vector<8x8xf32>
    %65 = vector.multi_reduction <maximumf>, %64, %cst_23 [2] : vector<8x8x8xf32> to vector<8x8xf32>
    %66 = vector.shape_cast %65 : vector<8x8xf32> to vector<8x8x1xf32>
    %67 = vector.broadcast %66 : vector<8x8x1xf32> to vector<8x8x8xf32>
    %68 = arith.subf %64, %67 : vector<8x8x8xf32>
    %69 = math.exp %68 : vector<8x8x8xf32>
    %cst_24 = arith.constant dense<0.000000e+00> : vector<8x8xf32>
    %70 = vector.multi_reduction <add>, %69, %cst_24 [2] : vector<8x8x8xf32> to vector<8x8xf32>
    %71 = vector.shape_cast %70 : vector<8x8xf32> to vector<8x8x1xf32>
    %72 = vector.broadcast %71 : vector<8x8x1xf32> to vector<8x8x8xf32>
    %73 = arith.divf %69, %72 : vector<8x8x8xf32>
    %74 = arith.truncf %73 : vector<8x8x8xf32> to vector<8x8x8xbf16>
    %75 = arith.truncf %58 : vector<8x8x8xf32> to vector<8x8x8xbf16>
    "tpu.trace_start"() <{level = 10 : i32, message = "nqk,nkd->nqd"}> : () -> ()
    %cst_25 = arith.constant dense<0.000000e+00> : vector<8x8x8xf32>
    %76 = tpu.matmul %74, %75, %cst_25 {dimension_numbers = #tpu.dot_dimension_numbers<[2], [1], [1], [2], [0, 0, 0, 1, 1, 2], [0], [0]>} : vector<8x8x8xbf16>, vector<8x8x8xbf16>, vector<8x8x8xf32> -> vector<8x8x8xf32>
    "tpu.trace_stop"() : () -> ()
    %77 = vector.extract_strided_slice %76 {offsets = [0, 0, 0], sizes = [2, 8, 8], strides = [1, 1, 1]} : vector<8x8x8xf32> to vector<2x8x8xf32>
    %78 = vector.extract_strided_slice %76 {offsets = [2, 0, 0], sizes = [2, 8, 8], strides = [1, 1, 1]} : vector<8x8x8xf32> to vector<2x8x8xf32>
    %79 = vector.extract_strided_slice %76 {offsets = [4, 0, 0], sizes = [2, 8, 8], strides = [1, 1, 1]} : vector<8x8x8xf32> to vector<2x8x8xf32>
    %80 = vector.extract_strided_slice %76 {offsets = [6, 0, 0], sizes = [2, 8, 8], strides = [1, 1, 1]} : vector<8x8x8xf32> to vector<2x8x8xf32>
    %81 = tpu.concatenate %77, %78, %79, %80 in 2 : vector<2x8x8xf32>, vector<2x8x8xf32>, vector<2x8x8xf32>, vector<2x8x8xf32> -> vector<2x8x32xf32>
    %82 = vector.shape_cast %81 : vector<2x8x32xf32> to vector<16x32xf32>
    %83 = arith.truncf %82 : vector<16x32xf32> to vector<16x32xbf16>
    %cst_26 = arith.constant dense<0.000000e+00> : vector<16x32xf32>
    %84 = tpu.matmul %83, %8, %cst_26 {dimension_numbers = #tpu.dot_dimension_numbers<[1], [0], [0], [1], [0, 0, 1, 1], [], []>} : vector<16x32xbf16>, vector<32x32xbf16>, vector<16x32xf32> -> vector<16x32xf32>
    %85 = arith.addf %6, %84 : vector<16x32xf32>
    %86 = vector.broadcast %14 : vector<1x32xf32> to vector<16x32xf32>
    %87 = arith.addf %85, %86 : vector<16x32xf32>
    %cst_27 = arith.constant dense<0.000000e+00> : vector<16xf32>
    %88 = vector.multi_reduction <add>, %87, %cst_27 [1] : vector<16x32xf32> to vector<16xf32>
    %89 = vector.shape_cast %88 : vector<16xf32> to vector<16x1xf32>
    %cst_28 = arith.constant 3.200000e+01 : f32
    %90 = vector.broadcast %cst_28 : f32 to vector<16x1xf32>
    %91 = arith.divf %89, %90 : vector<16x1xf32>
    %92 = vector.broadcast %91 : vector<16x1xf32> to vector<16x32xf32>
    %93 = arith.subf %87, %92 : vector<16x32xf32>
    %94 = arith.mulf %93, %93 : vector<16x32xf32>
    %cst_29 = arith.constant dense<0.000000e+00> : vector<16xf32>
    %95 = vector.multi_reduction <add>, %94, %cst_29 [1] : vector<16x32xf32> to vector<16xf32>
    %96 = vector.shape_cast %95 : vector<16xf32> to vector<16x1xf32>
    %cst_30 = arith.constant 3.200000e+01 : f32
    %97 = vector.broadcast %cst_30 : f32 to vector<16x1xf32>
    %98 = arith.divf %96, %97 : vector<16x1xf32>
    %cst_31 = arith.constant 9.99999974E-6 : f32
    %99 = vector.broadcast %cst_31 : f32 to vector<16x1xf32>
    %100 = arith.addf %98, %99 : vector<16x1xf32>
    %101 = math.rsqrt %100 : vector<16x1xf32>
    %102 = vector.broadcast %101 : vector<16x1xf32> to vector<16x32xf32>
    %103 = arith.mulf %93, %102 : vector<16x32xf32>
    %104 = vector.broadcast %15 : vector<1x32xf32> to vector<16x32xf32>
    %105 = arith.mulf %103, %104 : vector<16x32xf32>
    %106 = vector.broadcast %16 : vector<1x32xf32> to vector<16x32xf32>
    %107 = arith.addf %105, %106 : vector<16x32xf32>
    %108 = arith.truncf %107 : vector<16x32xf32> to vector<16x32xbf16>
    %cst_32 = arith.constant dense<0.000000e+00> : vector<16x128xf32>
    %109 = tpu.matmul %108, %9, %cst_32 {dimension_numbers = #tpu.dot_dimension_numbers<[1], [0], [0], [1], [0, 0, 1, 1], [], []>} : vector<16x32xbf16>, vector<32x128xbf16>, vector<16x128xf32> -> vector<16x128xf32>
    %110 = vector.broadcast %17 : vector<1x128xf32> to vector<16x128xf32>
    %111 = arith.addf %109, %110 : vector<16x128xf32>
    %cst_33 = arith.constant 5.000000e-01 : f32
    %112 = vector.broadcast %cst_33 : f32 to vector<16x128xf32>
    %113 = arith.mulf %112, %111 : vector<16x128xf32>
    %114 = arith.mulf %111, %111 : vector<16x128xf32>
    %115 = arith.mulf %114, %111 : vector<16x128xf32>
    %cst_34 = arith.constant 4.471500e-02 : f32
    %116 = vector.broadcast %cst_34 : f32 to vector<16x128xf32>
    %117 = arith.mulf %116, %115 : vector<16x128xf32>
    %118 = arith.addf %111, %117 : vector<16x128xf32>
    %cst_35 = arith.constant 0.797884583 : f32
    %119 = vector.broadcast %cst_35 : f32 to vector<16x128xf32>
    %120 = arith.mulf %119, %118 : vector<16x128xf32>
    %121 = math.tanh %120 : vector<16x128xf32>
    %cst_36 = arith.constant 1.000000e+00 : f32
    %122 = vector.broadcast %cst_36 : f32 to vector<16x128xf32>
    %123 = arith.addf %122, %121 : vector<16x128xf32>
    %124 = arith.mulf %113, %123 : vector<16x128xf32>
    %125 = arith.truncf %124 : vector<16x128xf32> to vector<16x128xbf16>
    %cst_37 = arith.constant dense<0.000000e+00> : vector<16x32xf32>
    %126 = tpu.matmul %125, %10, %cst_37 {dimension_numbers = #tpu.dot_dimension_numbers<[1], [0], [0], [1], [0, 0, 1, 1], [], []>} : vector<16x128xbf16>, vector<128x32xbf16>, vector<16x32xf32> -> vector<16x32xf32>
    %127 = arith.addf %87, %126 : vector<16x32xf32>
    %128 = vector.broadcast %18 : vector<1x32xf32> to vector<16x32xf32>
    %129 = arith.addf %127, %128 : vector<16x32xf32>
    %c224 = arith.constant 224 : index
    %c0_38 = arith.constant 0 : index
    %130 = vector.load %arg1[%c224, %c0_38] : memref<480x128xbf16, #tpu.memory_space<vmem>>, vector<32x96xbf16>
    %c256 = arith.constant 256 : index
    %c0_39 = arith.constant 0 : index
    %131 = vector.load %arg1[%c256, %c0_39] : memref<480x128xbf16, #tpu.memory_space<vmem>>, vector<32x32xbf16>
    %c288 = arith.constant 288 : index
    %c0_40 = arith.constant 0 : index
    %132 = vector.load %arg1[%c288, %c0_40] : memref<480x128xbf16, #tpu.memory_space<vmem>>, vector<32x128xbf16>
    %c320 = arith.constant 320 : index
    %c0_41 = arith.constant 0 : index
    %133 = vector.load %arg1[%c320, %c0_41] : memref<480x128xbf16, #tpu.memory_space<vmem>>, vector<128x32xbf16>
    %c8 = arith.constant 8 : index
    %c0_42 = arith.constant 0 : index
    %134 = vector.load %arg2[%c8, %c0_42] : memref<24x128xf32, #tpu.memory_space<vmem>>, vector<1x32xf32>
    %c9 = arith.constant 9 : index
    %c0_43 = arith.constant 0 : index
    %135 = vector.load %arg2[%c9, %c0_43] : memref<24x128xf32, #tpu.memory_space<vmem>>, vector<1x32xf32>
    %c10 = arith.constant 10 : index
    %c0_44 = arith.constant 0 : index
    %136 = vector.load %arg2[%c10, %c0_44] : memref<24x128xf32, #tpu.memory_space<vmem>>, vector<1x96xf32>
    %c11 = arith.constant 11 : index
    %c0_45 = arith.constant 0 : index
    %137 = vector.load %arg2[%c11, %c0_45] : memref<24x128xf32, #tpu.memory_space<vmem>>, vector<1x32xf32>
    %c12 = arith.constant 12 : index
    %c0_46 = arith.constant 0 : index
    %138 = vector.load %arg2[%c12, %c0_46] : memref<24x128xf32, #tpu.memory_space<vmem>>, vector<1x32xf32>
    %c13 = arith.constant 13 : index
    %c0_47 = arith.constant 0 : index
    %139 = vector.load %arg2[%c13, %c0_47] : memref<24x128xf32, #tpu.memory_space<vmem>>, vector<1x32xf32>
    %c14 = arith.constant 14 : index
    %c0_48 = arith.constant 0 : index
    %140 = vector.load %arg2[%c14, %c0_48] : memref<24x128xf32, #tpu.memory_space<vmem>>, vector<1x128xf32>
    %c15 = arith.constant 15 : index
    %c0_49 = arith.constant 0 : index
    %141 = vector.load %arg2[%c15, %c0_49] : memref<24x128xf32, #tpu.memory_space<vmem>>, vector<1x32xf32>
    %cst_50 = arith.constant dense<0.000000e+00> : vector<16xf32>
    %142 = vector.multi_reduction <add>, %129, %cst_50 [1] : vector<16x32xf32> to vector<16xf32>
    %143 = vector.shape_cast %142 : vector<16xf32> to vector<16x1xf32>
    %cst_51 = arith.constant 3.200000e+01 : f32
    %144 = vector.broadcast %cst_51 : f32 to vector<16x1xf32>
    %145 = arith.divf %143, %144 : vector<16x1xf32>
    %146 = vector.broadcast %145 : vector<16x1xf32> to vector<16x32xf32>
    %147 = arith.subf %129, %146 : vector<16x32xf32>
    %148 = arith.mulf %147, %147 : vector<16x32xf32>
    %cst_52 = arith.constant dense<0.000000e+00> : vector<16xf32>
    %149 = vector.multi_reduction <add>, %148, %cst_52 [1] : vector<16x32xf32> to vector<16xf32>
    %150 = vector.shape_cast %149 : vector<16xf32> to vector<16x1xf32>
    %cst_53 = arith.constant 3.200000e+01 : f32
    %151 = vector.broadcast %cst_53 : f32 to vector<16x1xf32>
    %152 = arith.divf %150, %151 : vector<16x1xf32>
    %cst_54 = arith.constant 9.99999974E-6 : f32
    %153 = vector.broadcast %cst_54 : f32 to vector<16x1xf32>
    %154 = arith.addf %152, %153 : vector<16x1xf32>
    %155 = math.rsqrt %154 : vector<16x1xf32>
    %156 = vector.broadcast %155 : vector<16x1xf32> to vector<16x32xf32>
    %157 = arith.mulf %147, %156 : vector<16x32xf32>
    %158 = vector.broadcast %134 : vector<1x32xf32> to vector<16x32xf32>
    %159 = arith.mulf %157, %158 : vector<16x32xf32>
    %160 = vector.broadcast %135 : vector<1x32xf32> to vector<16x32xf32>
    %161 = arith.addf %159, %160 : vector<16x32xf32>
    %162 = arith.truncf %161 : vector<16x32xf32> to vector<16x32xbf16>
    %cst_55 = arith.constant dense<0.000000e+00> : vector<16x96xf32>
    %163 = tpu.matmul %162, %130, %cst_55 {dimension_numbers = #tpu.dot_dimension_numbers<[1], [0], [0], [1], [0, 0, 1, 1], [], []>} : vector<16x32xbf16>, vector<32x96xbf16>, vector<16x96xf32> -> vector<16x96xf32>
    %164 = vector.broadcast %136 : vector<1x96xf32> to vector<16x96xf32>
    %165 = arith.addf %163, %164 : vector<16x96xf32>
    %166 = vector.shape_cast %165 : vector<16x96xf32> to vector<2x8x96xf32>
    %167 = vector.extract_strided_slice %166 {offsets = [0, 0, 0], sizes = [2, 8, 8], strides = [1, 1, 1]} : vector<2x8x96xf32> to vector<2x8x8xf32>
    %168 = vector.extract_strided_slice %166 {offsets = [0, 0, 8], sizes = [2, 8, 8], strides = [1, 1, 1]} : vector<2x8x96xf32> to vector<2x8x8xf32>
    %169 = vector.extract_strided_slice %166 {offsets = [0, 0, 16], sizes = [2, 8, 8], strides = [1, 1, 1]} : vector<2x8x96xf32> to vector<2x8x8xf32>
    %170 = vector.extract_strided_slice %166 {offsets = [0, 0, 24], sizes = [2, 8, 8], strides = [1, 1, 1]} : vector<2x8x96xf32> to vector<2x8x8xf32>
    %171 = tpu.concatenate %167, %168, %169, %170 in 0 : vector<2x8x8xf32>, vector<2x8x8xf32>, vector<2x8x8xf32>, vector<2x8x8xf32> -> vector<8x8x8xf32>
    %172 = vector.extract_strided_slice %166 {offsets = [0, 0, 32], sizes = [2, 8, 8], strides = [1, 1, 1]} : vector<2x8x96xf32> to vector<2x8x8xf32>
    %173 = vector.extract_strided_slice %166 {offsets = [0, 0, 40], sizes = [2, 8, 8], strides = [1, 1, 1]} : vector<2x8x96xf32> to vector<2x8x8xf32>
    %174 = vector.extract_strided_slice %166 {offsets = [0, 0, 48], sizes = [2, 8, 8], strides = [1, 1, 1]} : vector<2x8x96xf32> to vector<2x8x8xf32>
    %175 = vector.extract_strided_slice %166 {offsets = [0, 0, 56], sizes = [2, 8, 8], strides = [1, 1, 1]} : vector<2x8x96xf32> to vector<2x8x8xf32>
    %176 = tpu.concatenate %172, %173, %174, %175 in 0 : vector<2x8x8xf32>, vector<2x8x8xf32>, vector<2x8x8xf32>, vector<2x8x8xf32> -> vector<8x8x8xf32>
    %177 = vector.extract_strided_slice %166 {offsets = [0, 0, 64], sizes = [2, 8, 8], strides = [1, 1, 1]} : vector<2x8x96xf32> to vector<2x8x8xf32>
    %178 = vector.extract_strided_slice %166 {offsets = [0, 0, 72], sizes = [2, 8, 8], strides = [1, 1, 1]} : vector<2x8x96xf32> to vector<2x8x8xf32>
    %179 = vector.extract_strided_slice %166 {offsets = [0, 0, 80], sizes = [2, 8, 8], strides = [1, 1, 1]} : vector<2x8x96xf32> to vector<2x8x8xf32>
    %180 = vector.extract_strided_slice %166 {offsets = [0, 0, 88], sizes = [2, 8, 8], strides = [1, 1, 1]} : vector<2x8x96xf32> to vector<2x8x8xf32>
    %181 = tpu.concatenate %177, %178, %179, %180 in 0 : vector<2x8x8xf32>, vector<2x8x8xf32>, vector<2x8x8xf32>, vector<2x8x8xf32> -> vector<8x8x8xf32>
    %182 = arith.truncf %171 : vector<8x8x8xf32> to vector<8x8x8xbf16>
    %183 = arith.truncf %176 : vector<8x8x8xf32> to vector<8x8x8xbf16>
    "tpu.trace_start"() <{level = 10 : i32, message = "nqd,nkd->nqk"}> : () -> ()
    %cst_56 = arith.constant dense<0.000000e+00> : vector<8x8x8xf32>
    %184 = tpu.matmul %182, %183, %cst_56 {dimension_numbers = #tpu.dot_dimension_numbers<[2], [2], [1], [1], [0, 0, 0, 1, 1, 1], [0], [0]>} : vector<8x8x8xbf16>, vector<8x8x8xbf16>, vector<8x8x8xf32> -> vector<8x8x8xf32>
    "tpu.trace_stop"() : () -> ()
    %185 = vector.shape_cast %5 : vector<8x8xf32> to vector<1x8x8xf32>
    %186 = vector.broadcast %185 : vector<1x8x8xf32> to vector<8x8x8xf32>
    %187 = arith.addf %184, %186 : vector<8x8x8xf32>
    %cst_57 = arith.constant dense<0xFF800000> : vector<8x8xf32>
    %188 = vector.multi_reduction <maximumf>, %187, %cst_57 [2] : vector<8x8x8xf32> to vector<8x8xf32>
    %189 = vector.shape_cast %188 : vector<8x8xf32> to vector<8x8x1xf32>
    %190 = vector.broadcast %189 : vector<8x8x1xf32> to vector<8x8x8xf32>
    %191 = arith.subf %187, %190 : vector<8x8x8xf32>
    %192 = math.exp %191 : vector<8x8x8xf32>
    %cst_58 = arith.constant dense<0.000000e+00> : vector<8x8xf32>
    %193 = vector.multi_reduction <add>, %192, %cst_58 [2] : vector<8x8x8xf32> to vector<8x8xf32>
    %194 = vector.shape_cast %193 : vector<8x8xf32> to vector<8x8x1xf32>
    %195 = vector.broadcast %194 : vector<8x8x1xf32> to vector<8x8x8xf32>
    %196 = arith.divf %192, %195 : vector<8x8x8xf32>
    %197 = arith.truncf %196 : vector<8x8x8xf32> to vector<8x8x8xbf16>
    %198 = arith.truncf %181 : vector<8x8x8xf32> to vector<8x8x8xbf16>
    "tpu.trace_start"() <{level = 10 : i32, message = "nqk,nkd->nqd"}> : () -> ()
    %cst_59 = arith.constant dense<0.000000e+00> : vector<8x8x8xf32>
    %199 = tpu.matmul %197, %198, %cst_59 {dimension_numbers = #tpu.dot_dimension_numbers<[2], [1], [1], [2], [0, 0, 0, 1, 1, 2], [0], [0]>} : vector<8x8x8xbf16>, vector<8x8x8xbf16>, vector<8x8x8xf32> -> vector<8x8x8xf32>
    "tpu.trace_stop"() : () -> ()
    %200 = vector.extract_strided_slice %199 {offsets = [0, 0, 0], sizes = [2, 8, 8], strides = [1, 1, 1]} : vector<8x8x8xf32> to vector<2x8x8xf32>
    %201 = vector.extract_strided_slice %199 {offsets = [2, 0, 0], sizes = [2, 8, 8], strides = [1, 1, 1]} : vector<8x8x8xf32> to vector<2x8x8xf32>
    %202 = vector.extract_strided_slice %199 {offsets = [4, 0, 0], sizes = [2, 8, 8], strides = [1, 1, 1]} : vector<8x8x8xf32> to vector<2x8x8xf32>
    %203 = vector.extract_strided_slice %199 {offsets = [6, 0, 0], sizes = [2, 8, 8], strides = [1, 1, 1]} : vector<8x8x8xf32> to vector<2x8x8xf32>
    %204 = tpu.concatenate %200, %201, %202, %203 in 2 : vector<2x8x8xf32>, vector<2x8x8xf32>, vector<2x8x8xf32>, vector<2x8x8xf32> -> vector<2x8x32xf32>
    %205 = vector.shape_cast %204 : vector<2x8x32xf32> to vector<16x32xf32>
    %206 = arith.truncf %205 : vector<16x32xf32> to vector<16x32xbf16>
    %cst_60 = arith.constant dense<0.000000e+00> : vector<16x32xf32>
    %207 = tpu.matmul %206, %131, %cst_60 {dimension_numbers = #tpu.dot_dimension_numbers<[1], [0], [0], [1], [0, 0, 1, 1], [], []>} : vector<16x32xbf16>, vector<32x32xbf16>, vector<16x32xf32> -> vector<16x32xf32>
    %208 = arith.addf %129, %207 : vector<16x32xf32>
    %209 = vector.broadcast %137 : vector<1x32xf32> to vector<16x32xf32>
    %210 = arith.addf %208, %209 : vector<16x32xf32>
    %cst_61 = arith.constant dense<0.000000e+00> : vector<16xf32>
    %211 = vector.multi_reduction <add>, %210, %cst_61 [1] : vector<16x32xf32> to vector<16xf32>
    %212 = vector.shape_cast %211 : vector<16xf32> to vector<16x1xf32>
    %cst_62 = arith.constant 3.200000e+01 : f32
    %213 = vector.broadcast %cst_62 : f32 to vector<16x1xf32>
    %214 = arith.divf %212, %213 : vector<16x1xf32>
    %215 = vector.broadcast %214 : vector<16x1xf32> to vector<16x32xf32>
    %216 = arith.subf %210, %215 : vector<16x32xf32>
    %217 = arith.mulf %216, %216 : vector<16x32xf32>
    %cst_63 = arith.constant dense<0.000000e+00> : vector<16xf32>
    %218 = vector.multi_reduction <add>, %217, %cst_63 [1] : vector<16x32xf32> to vector<16xf32>
    %219 = vector.shape_cast %218 : vector<16xf32> to vector<16x1xf32>
    %cst_64 = arith.constant 3.200000e+01 : f32
    %220 = vector.broadcast %cst_64 : f32 to vector<16x1xf32>
    %221 = arith.divf %219, %220 : vector<16x1xf32>
    %cst_65 = arith.constant 9.99999974E-6 : f32
    %222 = vector.broadcast %cst_65 : f32 to vector<16x1xf32>
    %223 = arith.addf %221, %222 : vector<16x1xf32>
    %224 = math.rsqrt %223 : vector<16x1xf32>
    %225 = vector.broadcast %224 : vector<16x1xf32> to vector<16x32xf32>
    %226 = arith.mulf %216, %225 : vector<16x32xf32>
    %227 = vector.broadcast %138 : vector<1x32xf32> to vector<16x32xf32>
    %228 = arith.mulf %226, %227 : vector<16x32xf32>
    %229 = vector.broadcast %139 : vector<1x32xf32> to vector<16x32xf32>
    %230 = arith.addf %228, %229 : vector<16x32xf32>
    %231 = arith.truncf %230 : vector<16x32xf32> to vector<16x32xbf16>
    %cst_66 = arith.constant dense<0.000000e+00> : vector<16x128xf32>
    %232 = tpu.matmul %231, %132, %cst_66 {dimension_numbers = #tpu.dot_dimension_numbers<[1], [0], [0], [1], [0, 0, 1, 1], [], []>} : vector<16x32xbf16>, vector<32x128xbf16>, vector<16x128xf32> -> vector<16x128xf32>
    %233 = vector.broadcast %140 : vector<1x128xf32> to vector<16x128xf32>
    %234 = arith.addf %232, %233 : vector<16x128xf32>
    %cst_67 = arith.constant 5.000000e-01 : f32
    %235 = vector.broadcast %cst_67 : f32 to vector<16x128xf32>
    %236 = arith.mulf %235, %234 : vector<16x128xf32>
    %237 = arith.mulf %234, %234 : vector<16x128xf32>
    %238 = arith.mulf %237, %234 : vector<16x128xf32>
    %cst_68 = arith.constant 4.471500e-02 : f32
    %239 = vector.broadcast %cst_68 : f32 to vector<16x128xf32>
    %240 = arith.mulf %239, %238 : vector<16x128xf32>
    %241 = arith.addf %234, %240 : vector<16x128xf32>
    %cst_69 = arith.constant 0.797884583 : f32
    %242 = vector.broadcast %cst_69 : f32 to vector<16x128xf32>
    %243 = arith.mulf %242, %241 : vector<16x128xf32>
    %244 = math.tanh %243 : vector<16x128xf32>
    %cst_70 = arith.constant 1.000000e+00 : f32
    %245 = vector.broadcast %cst_70 : f32 to vector<16x128xf32>
    %246 = arith.addf %245, %244 : vector<16x128xf32>
    %247 = arith.mulf %236, %246 : vector<16x128xf32>
    %248 = arith.truncf %247 : vector<16x128xf32> to vector<16x128xbf16>
    %cst_71 = arith.constant dense<0.000000e+00> : vector<16x32xf32>
    %249 = tpu.matmul %248, %133, %cst_71 {dimension_numbers = #tpu.dot_dimension_numbers<[1], [0], [0], [1], [0, 0, 1, 1], [], []>} : vector<16x128xbf16>, vector<128x32xbf16>, vector<16x32xf32> -> vector<16x32xf32>
    %250 = arith.addf %210, %249 : vector<16x32xf32>
    %251 = vector.broadcast %141 : vector<1x32xf32> to vector<16x32xf32>
    %252 = arith.addf %250, %251 : vector<16x32xf32>
    %c16 = arith.constant 16 : index
    %c0_72 = arith.constant 0 : index
    %253 = vector.load %arg2[%c16, %c0_72] : memref<24x128xf32, #tpu.memory_space<vmem>>, vector<1x32xf32>
    %c17 = arith.constant 17 : index
    %c0_73 = arith.constant 0 : index
    %254 = vector.load %arg2[%c17, %c0_73] : memref<24x128xf32, #tpu.memory_space<vmem>>, vector<1x32xf32>
    %cst_74 = arith.constant dense<0.000000e+00> : vector<16xf32>
    %255 = vector.multi_reduction <add>, %252, %cst_74 [1] : vector<16x32xf32> to vector<16xf32>
    %256 = vector.shape_cast %255 : vector<16xf32> to vector<16x1xf32>
    %cst_75 = arith.constant 3.200000e+01 : f32
    %257 = vector.broadcast %cst_75 : f32 to vector<16x1xf32>
    %258 = arith.divf %256, %257 : vector<16x1xf32>
    %259 = vector.broadcast %258 : vector<16x1xf32> to vector<16x32xf32>
    %260 = arith.subf %252, %259 : vector<16x32xf32>
    %261 = arith.mulf %260, %260 : vector<16x32xf32>
    %cst_76 = arith.constant dense<0.000000e+00> : vector<16xf32>
    %262 = vector.multi_reduction <add>, %261, %cst_76 [1] : vector<16x32xf32> to vector<16xf32>
    %263 = vector.shape_cast %262 : vector<16xf32> to vector<16x1xf32>
    %cst_77 = arith.constant 3.200000e+01 : f32
    %264 = vector.broadcast %cst_77 : f32 to vector<16x1xf32>
    %265 = arith.divf %263, %264 : vector<16x1xf32>
    %cst_78 = arith.constant 9.99999974E-6 : f32
    %266 = vector.broadcast %cst_78 : f32 to vector<16x1xf32>
    %267 = arith.addf %265, %266 : vector<16x1xf32>
    %268 = math.rsqrt %267 : vector<16x1xf32>
    %269 = vector.broadcast %268 : vector<16x1xf32> to vector<16x32xf32>
    %270 = arith.mulf %260, %269 : vector<16x32xf32>
    %271 = vector.broadcast %253 : vector<1x32xf32> to vector<16x32xf32>
    %272 = arith.mulf %270, %271 : vector<16x32xf32>
    %273 = vector.broadcast %254 : vector<1x32xf32> to vector<16x32xf32>
    %274 = arith.addf %272, %273 : vector<16x32xf32>
    %c448 = arith.constant 448 : index
    %c0_79 = arith.constant 0 : index
    %275 = vector.load %arg1[%c448, %c0_79] : memref<480x128xbf16, #tpu.memory_space<vmem>>, vector<32x128xbf16>
    %276 = arith.truncf %274 : vector<16x32xf32> to vector<16x32xbf16>
    %cst_80 = arith.constant dense<0.000000e+00> : vector<16x128xf32>
    %277 = tpu.matmul %276, %275, %cst_80 {dimension_numbers = #tpu.dot_dimension_numbers<[1], [0], [0], [1], [0, 0, 1, 1], [], []>} : vector<16x32xbf16>, vector<32x128xbf16>, vector<16x128xf32> -> vector<16x128xf32>
    %c0_81 = arith.constant 0 : index
    %c0_82 = arith.constant 0 : index
    %278 = vector.load %arg3[%c0_81, %c0_82] : memref<16x128xf32, #tpu.memory_space<vmem>>, vector<16x128xf32>
    tpu.vector_store %arg3[%c0_81, %c0_82], %277 {strides = array<i32>} : memref<16x128xf32, #tpu.memory_space<vmem>>, vector<16x128xf32>,
    %cst_83 = arith.constant 0.000000e+00 : f32
    %279 = vector.broadcast %cst_83 : f32 to vector<16x96xf32>
    %280 = tpu.concatenate %274, %279 in 1 : vector<16x32xf32>, vector<16x96xf32> -> vector<16x128xf32>
    %c0_84 = arith.constant 0 : index
    %c0_85 = arith.constant 0 : index
    %281 = vector.load %arg4[%c0_84, %c0_85] : memref<16x128xf32, #tpu.memory_space<vmem>>, vector<16x128xf32>
    tpu.vector_store %arg4[%c0_84, %c0_85], %280 {strides = array<i32>} : memref<16x128xf32, #tpu.memory_space<vmem>>, vector<16x128xf32>,
    return
  }
}

</mosaic_0001>

<llo_original>
// kernel: gpt_forward.1
$region0: #{gpt_forward.1}
  #allocation0 [shape = 'u32[]', space=smem, size = 0x4, offset = 0x4, fixed_abs, tag = 'smem constant byte address 0x4 - core index']
  #allocation1 [shape = 'u32[72,128]{1,0:T(1,128)}', space=vmem, size = 0x9000, scoped, tag = 'internal scratch']
  %s0 = inlined_call_operand.vmem [shape: f32[16,32], index: 0, kind: input, shape index: {}]
  %s1 = inlined_call_operand.vmem [shape: bf16[480,128], index: 1, kind: input, shape index: {}]
  %s2 = inlined_call_operand.vmem [shape: f32[24,128], index: 2, kind: input, shape index: {}]
  %s3 = inlined_call_operand.hbm [shape: f32[16,128], index: 3, kind: output, shape index: {0}]
  %s4 = inlined_call_operand.vmem [shape: f32[16,128], index: 4, kind: output, shape index: {1}]
  %5 = xla_tuple %s3, %s4
  %s6 = sld [smem:[#allocation0]]
  $region30: #{gpt_forward.1} parent=0
    _
  %s8 = ssub.s32 1, %s6
  %s9 = scalar_select 0, %s8, %s6
  $region1: #{gpt_forward.1} parent=0
    #allocation2 [shape = 'u8[8192]{0}', space=vmem, size = 0x2000, scoped, tag = 'output window, operand 0, single buffered']
    #allocation3 [shape = 's32[1]{0}', space=sflag, size = 0x4, scoped, tag = 'scoped memory for gpt_forward.1']
    %10 = vsyncpa [#allocation3], 0
    // Predicated region
    $region2: #{gpt_forward.1} parent=1 // pred_check
      _
    $region3: #{gpt_forward.1} parent=1 // pred_check_branch
      %12 = sbr.rel (0) target = $region5
    $region4: #{gpt_forward.1} parent=1 // pred_region
      _
    $region5: #{gpt_forward.1} parent=1 // pred_fallthru
      _
    // Predicated region
    $region6: #{gpt_forward.1} parent=1 // pred_check
      _
    $region7: #{gpt_forward.1} parent=1 // pred_check_branch
      %14 = sbr.rel (0) target = $region9
    $region8: #{gpt_forward.1} parent=1 // pred_region
      _
    $region9: #{gpt_forward.1} parent=1 // pred_fallthru
      _
    // Predicated region
    $region10: #{gpt_forward.1} parent=1 // pred_check
      _
    $region11: #{gpt_forward.1} parent=1 // pred_check_branch
      %16 = sbr.rel (0) target = $region13
    $region12: #{gpt_forward.1} parent=1 // pred_region
      _
    $region13: #{gpt_forward.1} parent=1 // pred_fallthru
      _
    %v18 = vlaneseq
    %v19 = vshrl.u32 %v18, 7
    %v20 = vlaneseq
    %v21 = vand.u32 %v20, 127
    %vm22 = vcmp.le.s32.totalorder %v21, %v19
    %v23 = vsel %vm22, 0.0, -1e+30
    %v24 = vld [vmem:[%s0] sm:$0xff]
    %v25 = vld [vmem:[%s0 + $0x8] sm:$0xff]
    %v26 = vld [vmem:[%s1] sm:$0xf]
    %v27 = vld [vmem:[%s1 + $0x4] sm:$0xf]
    %v28 = vld [vmem:[%s1 + $0x8] sm:$0xf]
    %v29 = vld [vmem:[%s1 + $0xc] sm:$0xf]
    %v30 = vld [vmem:[%s1 + $0x10] sm:$0xf]
    %v31 = vld [vmem:[%s1 + $0x14] sm:$0xf]
    %v32 = vld [vmem:[%s1 + $0x18] sm:$0xf]
    %v33 = vld [vmem:[%s1 + $0x1c] sm:$0xf]
    %v34 = vld [vmem:[%s1 + $0x20] sm:$0xf]
    %v35 = vld [vmem:[%s1 + $0x24] sm:$0xf]
    %v36 = vld [vmem:[%s1 + $0x28] sm:$0xf]
    %v37 = vld [vmem:[%s1 + $0x2c] sm:$0xf]
    %v38 = vld [vmem:[%s1 + $0x30] sm:$0xf]
    %v39 = vld [vmem:[%s1 + $0x34] sm:$0xf]
    %v40 = vld [vmem:[%s1 + $0x38] sm:$0xf]
    %v41 = vld [vmem:[%s1 + $0x3c] sm:$0xf]
    %v42 = vld [vmem:[%s1 + $0x40] sm:$0xf]
    %v43 = vld [vmem:[%s1 + $0x44] sm:$0xf]
    %v44 = vld [vmem:[%s1 + $0x48] sm:$0xf]
    %v45 = vld [vmem:[%s1 + $0x4c] sm:$0xf]
    %v46 = vld [vmem:[%s1 + $0x50] sm:$0xf]
    %v47 = vld [vmem:[%s1 + $0x54] sm:$0xf]
    %v48 = vld [vmem:[%s1 + $0x58] sm:$0xf]
    %v49 = vld [vmem:[%s1 + $0x5c] sm:$0xf]
    %v50 = vld [vmem:[%s1 + $0x60] sm:$0xf]
    %v51 = vld [vmem:[%s1 + $0x64] sm:$0xf]
    %v52 = vld [vmem:[%s1 + $0x68] sm:$0xf]
    %v53 = vld [vmem:[%s1 + $0x6c] sm:$0xf]
    %v54 = vld [vmem:[%s2] sm:$0x1]
    %v55 = vld [vmem:[%s2 + $0x1] sm:$0x1]
    %v56 = vld [vmem:[%s2 + $0x2] sm:$0x1]
    %v57 = vld [vmem:[%s2 + $0x3] sm:$0x1]
    %v58 = vld [vmem:[%s2 + $0x4] sm:$0x1]
    %v59 = vld [vmem:[%s2 + $0x5] sm:$0x1]
    %v60 = vld [vmem:[%s2 + $0x6] sm:$0x1]
    %v61 = vld [vmem:[%s2 + $0x7] sm:$0x1]
    %vm62 = vcmask 261120
    %v63 = vsel %vm62, %v24, 0.0
    %64 = vadd.xlane.f32.xlu0 %v63
    %v65 = vpop.xlane.xlu0 %64
    %v66 = vsel %vm62, %v25, 0.0
    %67 = vadd.xlane.f32.xlu0 %v66
    %v68 = vpop.xlane.xlu0 %67
    %v69 = vrcp.pop 32.0
    %v70 = vmul.f32 32.0, %v69
    %v71 = vsub.f32 1.0, %v70
    %v72 = vmul.f32 %v69, %v71
    %v73 = vadd.f32 %v69, %v72
    %vm74 = vweird.f32 %v69
    %v75 = vsel %vm74, %v69, %v73
    %v76 = vmul.f32 %v65, %v75
    %v77 = vmul.f32 %v68, %v75
    %v78 = vsub.f32 %v24, %v76
    %v79 = vsub.f32 %v25, %v77
    %v80 = vmul.f32 %v78, %v78
    %v81 = vmul.f32 %v79, %v79
    %v82 = vsel %vm62, %v80, 0.0
    %83 = vadd.xlane.f32.xlu0 %v82
    %v84 = vpop.xlane.xlu0 %83
    %v85 = vsel %vm62, %v81, 0.0
    %86 = vadd.xlane.f32.xlu0 %v85
    %v87 = vpop.xlane.xlu0 %86
    %v88 = vmul.f32 %v84, %v75
    %v89 = vmul.f32 %v87, %v75
    %v90 = vadd.f32 %v88, 1e-05
    %v91 = vadd.f32 %v89, 1e-05
    %v92 = vrsqrt.pop %v90
    %v93 = vmul.f32 %v92, %v90
    %v94 = vmul.f32 %v93, %v92
    %v95 = vmul.f32 0.5, %v94
    %v96 = vsub.f32 1.5, %v95
    %v97 = vmul.f32 %v92, %v96
    %vm98 = vweird.f32 %v90
    %vm99 = vweird.f32 %v92
    %vm100 = vmor %vm98, %vm99
    %v101 = vsel %vm100, %v92, %v97
    %v102 = vrsqrt.pop %v91
    %v103 = vmul.f32 %v102, %v91
    %v104 = vmul.f32 %v103, %v102
    %v105 = vmul.f32 0.5, %v104
    %v106 = vsub.f32 1.5, %v105
    %v107 = vmul.f32 %v102, %v106
    %vm108 = vweird.f32 %v91
    %vm109 = vweird.f32 %v102
    %vm110 = vmor %vm108, %vm109
    %v111 = vsel %vm110, %v102, %v107
    %v112 = vmul.f32 %v78, %v101
    %v113 = vmul.f32 %v79, %v111
    %v114 = vperm.slane %v54, 0
    %v115 = vmul.f32 %v112, %v114
    %v116 = vmul.f32 %v113, %v114
    %v117 = vperm.slane %v55, 0
    %v118 = vadd.f32 %v115, %v117
    %v119 = vadd.f32 %v116, %v117
    %v120 = vpack.c.bf16 %v119, %v118
    %v121 = vperm.slane %v56, 0
    %v126 = vunpack.c.l.b16 %v26
    %v127 = vunpack.c.l.b16 %v27
    %v128 = vunpack.c.l.b16 %v28
    %v129 = vunpack.c.l.b16 %v29
    %v130 = vpack.c.b16 %v127, %v126
    %v131 = vpack.c.b16 %v129, %v128
    %v135 = vsel %vm62, %v120, 0
    %137 = vmatpush.bf16.msra.mxu0 0
    %138 = vmatpush.bf16.msra.mxu0 0
    %139 = vmatpush.bf16.msra.mxu0 0
    %140 = vmatpush.bf16.msra.mxu0 0
    %141 = vmatpush.bf16.msra.mxu0 0
    %142 = vmatpush.bf16.msra.mxu0 0
    %143 = vmatpush.bf16.msra.mxu0 %v131
    %144 = vmatpush.bf16.msra.mxu0 %v130
    %145 = vmatmul.bf16.gmra.mxu0 %v135
    %v146 = vpop.f32.mrf.mxu0
    %v147 = vadd.f32 %v121, %v146
    %v148 = vpop.f32.mrf.mxu0
    %v149 = vadd.f32 %v121, %v148
    %150 = vdwg.mxu0
    %153 = vrot.lane.b32.xlu0 %v147, 120
    %v154 = vpop.permute.xlu0 %153
    %155 = vrot.lane.b32.xlu0 %v149, 120
    %v156 = vpop.permute.xlu0 %155
    %159 = vrot.lane.b32.xlu0 %v147, 112
    %v160 = vpop.permute.xlu0 %159
    %161 = vrot.lane.b32.xlu0 %v149, 112
    %v162 = vpop.permute.xlu0 %161
    %165 = vrot.lane.b32.xlu0 %v147, 104
    %v166 = vpop.permute.xlu0 %165
    %167 = vrot.lane.b32.xlu0 %v149, 104
    %v168 = vpop.permute.xlu0 %167
    %v171 = vpack.c.bf16 %v147, %v147
    %v172 = vpack.c.bf16 %v149, %v149
    %v173 = vpack.c.bf16 %v154, %v154
    %v174 = vpack.c.bf16 %v156, %v156
    %v175 = vpack.c.bf16 %v160, %v160
    %v176 = vpack.c.bf16 %v162, %v162
    %v177 = vpack.c.bf16 %v166, %v166
    %v178 = vpack.c.bf16 %v168, %v168
    %v180 = vunpack.c.l.b16 %v171
    %v181 = vpack.c.b16 %v180, %v180
    %182 = vrot.lane.b32.xlu0 %v181, 96
    %v183 = vpop.permute.xlu0 %182
    %vm184 = vcmask 64512
    %v186 = vsel %vm184, %v171, 0
    %v189 = vsel %vm184, %v183, 0
    %191 = vmatpush.bf16.xpose.msra.mxu0 0
    %192 = vmatpush.bf16.xpose.msra.mxu0 0
    %193 = vmatpush.bf16.xpose.msra.mxu0 0
    %194 = vmatpush.bf16.xpose.msra.mxu0 0
    %195 = vmatpush.bf16.xpose.msra.mxu0 0
    %196 = vmatpush.bf16.xpose.msra.mxu0 0
    %197 = vmatpush.bf16.xpose.msra.mxu0 0
    %198 = vmatpush.bf16.xpose.msra.mxu0 %v189
    %199 = vmatmul.bf16.gmra.mxu0 %v186
    %v200 = vpop.f32.mrf.mxu0
    %v201 = vadd.f32 %v23, %v200
    %v202 = vpop.f32.mrf.mxu0
    %203 = vdwg.mxu0
    %v205 = vunpack.c.l.b16 %v172
    %v206 = vpack.c.b16 %v205, %v205
    %207 = vrot.lane.b32.xlu0 %v206, 96
    %v208 = vpop.permute.xlu0 %207
    %v210 = vsel %vm184, %v172, 0
    %v213 = vsel %vm184, %v208, 0
    %215 = vmatpush.bf16.xpose.msra.mxu0 0
    %216 = vmatpush.bf16.xpose.msra.mxu0 0
    %217 = vmatpush.bf16.xpose.msra.mxu0 0
    %218 = vmatpush.bf16.xpose.msra.mxu0 0
    %219 = vmatpush.bf16.xpose.msra.mxu0 0
    %220 = vmatpush.bf16.xpose.msra.mxu0 0
    %221 = vmatpush.bf16.xpose.msra.mxu0 0
    %222 = vmatpush.bf16.xpose.msra.mxu0 %v213
    %223 = vmatmul.bf16.gmra.mxu0 %v210
    %v224 = vpop.f32.mrf.mxu0
    %v225 = vadd.f32 %v23, %v224
    %v226 = vpop.f32.mrf.mxu0
    %227 = vdwg.mxu0
    %v229 = vunpack.c.l.b16 %v173
    %v230 = vpack.c.b16 %v229, %v229
    %231 = vrot.lane.b32.xlu0 %v230, 96
    %v232 = vpop.permute.xlu0 %231
    %v234 = vsel %vm184, %v173, 0
    %v237 = vsel %vm184, %v232, 0
    %239 = vmatpush.bf16.xpose.msra.mxu0 0
    %240 = vmatpush.bf16.xpose.msra.mxu0 0
    %241 = vmatpush.bf16.xpose.msra.mxu0 0
    %242 = vmatpush.bf16.xpose.msra.mxu0 0
    %243 = vmatpush.bf16.xpose.msra.mxu0 0
    %244 = vmatpush.bf16.xpose.msra.mxu0 0
    %245 = vmatpush.bf16.xpose.msra.mxu0 0
    %246 = vmatpush.bf16.xpose.msra.mxu0 %v237
    %247 = vmatmul.bf16.gmra.mxu0 %v234
    %v248 = vpop.f32.mrf.mxu0
    %v249 = vadd.f32 %v23, %v248
    %v250 = vpop.f32.mrf.mxu0
    %251 = vdwg.mxu0
    %v253 = vunpack.c.l.b16 %v174
    %v254 = vpack.c.b16 %v253, %v253
    %255 = vrot.lane.b32.xlu0 %v254, 96
    %v256 = vpop.permute.xlu0 %255
    %v258 = vsel %vm184, %v174, 0
    %v261 = vsel %vm184, %v256, 0
    %263 = vmatpush.bf16.xpose.msra.mxu0 0
    %264 = vmatpush.bf16.xpose.msra.mxu0 0
    %265 = vmatpush.bf16.xpose.msra.mxu0 0
    %266 = vmatpush.bf16.xpose.msra.mxu0 0
    %267 = vmatpush.bf16.xpose.msra.mxu0 0
    %268 = vmatpush.bf16.xpose.msra.mxu0 0
    %269 = vmatpush.bf16.xpose.msra.mxu0 0
    %270 = vmatpush.bf16.xpose.msra.mxu0 %v261
    %271 = vmatmul.bf16.gmra.mxu0 %v258
    %v272 = vpop.f32.mrf.mxu0
    %v273 = vadd.f32 %v23, %v272
    %v274 = vpop.f32.mrf.mxu0
    %275 = vdwg.mxu0
    %v277 = vunpack.c.l.b16 %v175
    %v278 = vpack.c.b16 %v277, %v277
    %279 = vrot.lane.b32.xlu0 %v278, 96
    %v280 = vpop.permute.xlu0 %279
    %v282 = vsel %vm184, %v175, 0
    %v285 = vsel %vm184, %v280, 0
    %287 = vmatpush.bf16.xpose.msra.mxu0 0
    %288 = vmatpush.bf16.xpose.msra.mxu0 0
    %289 = vmatpush.bf16.xpose.msra.mxu0 0
    %290 = vmatpush.bf16.xpose.msra.mxu0 0
    %291 = vmatpush.bf16.xpose.msra.mxu0 0
    %292 = vmatpush.bf16.xpose.msra.mxu0 0
    %293 = vmatpush.bf16.xpose.msra.mxu0 0
    %294 = vmatpush.bf16.xpose.msra.mxu0 %v285
    %295 = vmatmul.bf16.gmra.mxu0 %v282
    %v296 = vpop.f32.mrf.mxu0
    %v297 = vadd.f32 %v23, %v296
    %v298 = vpop.f32.mrf.mxu0
    %299 = vdwg.mxu0
    %v301 = vunpack.c.l.b16 %v176
    %v302 = vpack.c.b16 %v301, %v301
    %303 = vrot.lane.b32.xlu0 %v302, 96
    %v304 = vpop.permute.xlu0 %303
    %v306 = vsel %vm184, %v176, 0
    %v309 = vsel %vm184, %v304, 0
    %311 = vmatpush.bf16.xpose.msra.mxu0 0
    %312 = vmatpush.bf16.xpose.msra.mxu0 0
    %313 = vmatpush.bf16.xpose.msra.mxu0 0
    %314 = vmatpush.bf16.xpose.msra.mxu0 0
    %315 = vmatpush.bf16.xpose.msra.mxu0 0
    %316 = vmatpush.bf16.xpose.msra.mxu0 0
    %317 = vmatpush.bf16.xpose.msra.mxu0 0
    %318 = vmatpush.bf16.xpose.msra.mxu0 %v309
    %319 = vmatmul.bf16.gmra.mxu0 %v306
    %v320 = vpop.f32.mrf.mxu0
    %v321 = vadd.f32 %v23, %v320
    %v322 = vpop.f32.mrf.mxu0
    %323 = vdwg.mxu0
    %v325 = vunpack.c.l.b16 %v177
    %v326 = vpack.c.b16 %v325, %v325
    %327 = vrot.lane.b32.xlu0 %v326, 96
    %v328 = vpop.permute.xlu0 %327
    %v330 = vsel %vm184, %v177, 0
    %v333 = vsel %vm184, %v328, 0
    %335 = vmatpush.bf16.xpose.msra.mxu0 0
    %336 = vmatpush.bf16.xpose.msra.mxu0 0
    %337 = vmatpush.bf16.xpose.msra.mxu0 0
    %338 = vmatpush.bf16.xpose.msra.mxu0 0
    %339 = vmatpush.bf16.xpose.msra.mxu0 0
    %340 = vmatpush.bf16.xpose.msra.mxu0 0
    %341 = vmatpush.bf16.xpose.msra.mxu0 0
    %342 = vmatpush.bf16.xpose.msra.mxu0 %v333
    %343 = vmatmul.bf16.gmra.mxu0 %v330
    %v344 = vpop.f32.mrf.mxu0
    %v345 = vadd.f32 %v23, %v344
    %v346 = vpop.f32.mrf.mxu0
    %347 = vdwg.mxu0
    %v349 = vunpack.c.l.b16 %v178
    %v350 = vpack.c.b16 %v349, %v349
    %351 = vrot.lane.b32.xlu0 %v350, 96
    %v352 = vpop.permute.xlu0 %351
    %v354 = vsel %vm184, %v178, 0
    %v357 = vsel %vm184, %v352, 0
    %359 = vmatpush.bf16.xpose.msra.mxu0 0
    %360 = vmatpush.bf16.xpose.msra.mxu0 0
    %361 = vmatpush.bf16.xpose.msra.mxu0 0
    %362 = vmatpush.bf16.xpose.msra.mxu0 0
    %363 = vmatpush.bf16.xpose.msra.mxu0 0
    %364 = vmatpush.bf16.xpose.msra.mxu0 0
    %365 = vmatpush.bf16.xpose.msra.mxu0 0
    %366 = vmatpush.bf16.xpose.msra.mxu0 %v357
    %367 = vmatmul.bf16.gmra.mxu0 %v354
    %v368 = vpop.f32.mrf.mxu0
    %v369 = vadd.f32 %v23, %v368
    %v370 = vpop.f32.mrf.mxu0
    %371 = vdwg.mxu0
    %v372 = vsel %vm184, %v201, -inf
    %373 = vmax.xlane.f32.xlu0 %v372
    %v374 = vpop.xlane.xlu0 %373
    %v375 = vsel %vm184, %v225, -inf
    %376 = vmax.xlane.f32.xlu0 %v375
    %v377 = vpop.xlane.xlu0 %376
    %v378 = vsel %vm184, %v249, -inf
    %379 = vmax.xlane.f32.xlu0 %v378
    %v380 = vpop.xlane.xlu0 %379
    %v381 = vsel %vm184, %v273, -inf
    %382 = vmax.xlane.f32.xlu0 %v381
    %v383 = vpop.xlane.xlu0 %382
    %v384 = vsel %vm184, %v297, -inf
    %385 = vmax.xlane.f32.xlu0 %v384
    %v386 = vpop.xlane.xlu0 %385
    %v387 = vsel %vm184, %v321, -inf
    %388 = vmax.xlane.f32.xlu0 %v387
    %v389 = vpop.xlane.xlu0 %388
    %v390 = vsel %vm184, %v345, -inf
    %391 = vmax.xlane.f32.xlu0 %v390
    %v392 = vpop.xlane.xlu0 %391
    %v393 = vsel %vm184, %v369, -inf
    %394 = vmax.xlane.f32.xlu0 %v393
    %v395 = vpop.xlane.xlu0 %394
    %v396 = vsub.f32 %v201, %v374
    %v397 = vsub.f32 %v225, %v377
    %v398 = vsub.f32 %v249, %v380
    %v399 = vsub.f32 %v273, %v383
    %v400 = vsub.f32 %v297, %v386
    %v401 = vsub.f32 %v321, %v389
    %v402 = vsub.f32 %v345, %v392
    %v403 = vsub.f32 %v369, %v395
    %v404 = vmul.f32 %v396, 1.442695
    %v405 = vpow.pop %v404
    %v406 = vmul.f32 %v397, 1.442695
    %v407 = vpow.pop %v406
    %v408 = vmul.f32 %v398, 1.442695
    %v409 = vpow.pop %v408
    %v410 = vmul.f32 %v399, 1.442695
    %v411 = vpow.pop %v410
    %v412 = vmul.f32 %v400, 1.442695
    %v413 = vpow.pop %v412
    %v414 = vmul.f32 %v401, 1.442695
    %v415 = vpow.pop %v414
    %v416 = vmul.f32 %v402, 1.442695
    %v417 = vpow.pop %v416
    %v418 = vmul.f32 %v403, 1.442695
    %v419 = vpow.pop %v418
    %v420 = vsel %vm184, %v405, 0.0
    %421 = vadd.xlane.f32.xlu0 %v420
    %v422 = vpop.xlane.xlu0 %421
    %v423 = vsel %vm184, %v407, 0.0
    %424 = vadd.xlane.f32.xlu0 %v423
    %v425 = vpop.xlane.xlu0 %424
    %v426 = vsel %vm184, %v409, 0.0
    %427 = vadd.xlane.f32.xlu0 %v426
    %v428 = vpop.xlane.xlu0 %427
    %v429 = vsel %vm184, %v411, 0.0
    %430 = vadd.xlane.f32.xlu0 %v429
    %v431 = vpop.xlane.xlu0 %430
    %v432 = vsel %vm184, %v413, 0.0
    %433 = vadd.xlane.f32.xlu0 %v432
    %v434 = vpop.xlane.xlu0 %433
    %v435 = vsel %vm184, %v415, 0.0
    %436 = vadd.xlane.f32.xlu0 %v435
    %v437 = vpop.xlane.xlu0 %436
    %v438 = vsel %vm184, %v417, 0.0
    %439 = vadd.xlane.f32.xlu0 %v438
    %v440 = vpop.xlane.xlu0 %439
    %v441 = vsel %vm184, %v419, 0.0
    %442 = vadd.xlane.f32.xlu0 %v441
    %v443 = vpop.xlane.xlu0 %442
    %v444 = vrcp.pop %v422
    %v445 = vmul.f32 %v422, %v444
    %v446 = vsub.f32 1.0, %v445
    %v447 = vmul.f32 %v444, %v446
    %v448 = vadd.f32 %v444, %v447
    %vm449 = vweird.f32 %v422
    %vm450 = vweird.f32 %v444
    %vm451 = vmor %vm449, %vm450
    %v452 = vsel %vm451, %v444, %v448
    %v453 = vand.u32 2147483647, %v422
    %vm454 = vcmp.eq.f32.partialorder %v453, 8.507059e+37
    %v455 = vand.u32 %v422, 2147483648
    %v456 = vor.u32 1.1754944e-38, %v455
    %v457 = vsel %vm454, %v456, %v452
    %v458 = vmul.f32 %v405, %v457
    %v459 = vrcp.pop %v425
    %v460 = vmul.f32 %v425, %v459
    %v461 = vsub.f32 1.0, %v460
    %v462 = vmul.f32 %v459, %v461
    %v463 = vadd.f32 %v459, %v462
    %vm464 = vweird.f32 %v425
    %vm465 = vweird.f32 %v459
    %vm466 = vmor %vm464, %vm465
    %v467 = vsel %vm466, %v459, %v463
    %v468 = vand.u32 2147483647, %v425
    %vm469 = vcmp.eq.f32.partialorder %v468, 8.507059e+37
    %v470 = vand.u32 %v425, 2147483648
    %v471 = vor.u32 1.1754944e-38, %v470
    %v472 = vsel %vm469, %v471, %v467
    %v473 = vmul.f32 %v407, %v472
    %v474 = vrcp.pop %v428
    %v475 = vmul.f32 %v428, %v474
    %v476 = vsub.f32 1.0, %v475
    %v477 = vmul.f32 %v474, %v476
    %v478 = vadd.f32 %v474, %v477
    %vm479 = vweird.f32 %v428
    %vm480 = vweird.f32 %v474
    %vm481 = vmor %vm479, %vm480
    %v482 = vsel %vm481, %v474, %v478
    %v483 = vand.u32 2147483647, %v428
    %vm484 = vcmp.eq.f32.partialorder %v483, 8.507059e+37
    %v485 = vand.u32 %v428, 2147483648
    %v486 = vor.u32 1.1754944e-38, %v485
    %v487 = vsel %vm484, %v486, %v482
    %v488 = vmul.f32 %v409, %v487
    %v489 = vrcp.pop %v431
    %v490 = vmul.f32 %v431, %v489
    %v491 = vsub.f32 1.0, %v490
    %v492 = vmul.f32 %v489, %v491
    %v493 = vadd.f32 %v489, %v492
    %vm494 = vweird.f32 %v431
    %vm495 = vweird.f32 %v489
    %vm496 = vmor %vm494, %vm495
    %v497 = vsel %vm496, %v489, %v493
    %v498 = vand.u32 2147483647, %v431
    %vm499 = vcmp.eq.f32.partialorder %v498, 8.507059e+37
    %v500 = vand.u32 %v431, 2147483648
    %v501 = vor.u32 1.1754944e-38, %v500
    %v502 = vsel %vm499, %v501, %v497
    %v503 = vmul.f32 %v411, %v502
    %v504 = vrcp.pop %v434
    %v505 = vmul.f32 %v434, %v504
    %v506 = vsub.f32 1.0, %v505
    %v507 = vmul.f32 %v504, %v506
    %v508 = vadd.f32 %v504, %v507
    %vm509 = vweird.f32 %v434
    %vm510 = vweird.f32 %v504
    %vm511 = vmor %vm509, %vm510
    %v512 = vsel %vm511, %v504, %v508
    %v513 = vand.u32 2147483647, %v434
    %vm514 = vcmp.eq.f32.partialorder %v513, 8.507059e+37
    %v515 = vand.u32 %v434, 2147483648
    %v516 = vor.u32 1.1754944e-38, %v515
    %v517 = vsel %vm514, %v516, %v512
    %v518 = vmul.f32 %v413, %v517
    %v519 = vrcp.pop %v437
    %v520 = vmul.f32 %v437, %v519
    %v521 = vsub.f32 1.0, %v520
    %v522 = vmul.f32 %v519, %v521
    %v523 = vadd.f32 %v519, %v522
    %vm524 = vweird.f32 %v437
    %vm525 = vweird.f32 %v519
    %vm526 = vmor %vm524, %vm525
    %v527 = vsel %vm526, %v519, %v523
    %v528 = vand.u32 2147483647, %v437
    %vm529 = vcmp.eq.f32.partialorder %v528, 8.507059e+37
    %v530 = vand.u32 %v437, 2147483648
    %v531 = vor.u32 1.1754944e-38, %v530
    %v532 = vsel %vm529, %v531, %v527
    %v533 = vmul.f32 %v415, %v532
    %v534 = vrcp.pop %v440
    %v535 = vmul.f32 %v440, %v534
    %v536 = vsub.f32 1.0, %v535
    %v537 = vmul.f32 %v534, %v536
    %v538 = vadd.f32 %v534, %v537
    %vm539 = vweird.f32 %v440
    %vm540 = vweird.f32 %v534
    %vm541 = vmor %vm539, %vm540
    %v542 = vsel %vm541, %v534, %v538
    %v543 = vand.u32 2147483647, %v440
    %vm544 = vcmp.eq.f32.partialorder %v543, 8.507059e+37
    %v545 = vand.u32 %v440, 2147483648
    %v546 = vor.u32 1.1754944e-38, %v545
    %v547 = vsel %vm544, %v546, %v542
    %v548 = vmul.f32 %v417, %v547
    %v549 = vrcp.pop %v443
    %v550 = vmul.f32 %v443, %v549
    %v551 = vsub.f32 1.0, %v550
    %v552 = vmul.f32 %v549, %v551
    %v553 = vadd.f32 %v549, %v552
    %vm554 = vweird.f32 %v443
    %vm555 = vweird.f32 %v549
    %vm556 = vmor %vm554, %vm555
    %v557 = vsel %vm556, %v549, %v553
    %v558 = vand.u32 2147483647, %v443
    %vm559 = vcmp.eq.f32.partialorder %v558, 8.507059e+37
    %v560 = vand.u32 %v443, 2147483648
    %v561 = vor.u32 1.1754944e-38, %v560
    %v562 = vsel %vm559, %v561, %v557
    %v563 = vmul.f32 %v419, %v562
    %v564 = vpack.c.bf16 %v458, %v458
    %v565 = vpack.c.bf16 %v473, %v473
    %v566 = vpack.c.bf16 %v488, %v488
    %v567 = vpack.c.bf16 %v503, %v503
    %v568 = vpack.c.bf16 %v518, %v518
    %v569 = vpack.c.bf16 %v533, %v533
    %v570 = vpack.c.bf16 %v548, %v548
    %v571 = vpack.c.bf16 %v563, %v563
    %572 = vrot.lane.b32.xlu0 %v181, 64
    %v573 = vpop.permute.xlu0 %572
    %v575 = vsel %vm184, %v564, 0
    %vm577 = vcmask 1043456
    %v579 = vsel %vm577, %v573, 0
    %581 = vmatpush.bf16.msra.mxu0 0
    %582 = vmatpush.bf16.msra.mxu0 0
    %583 = vmatpush.bf16.msra.mxu0 0
    %584 = vmatpush.bf16.msra.mxu0 0
    %585 = vmatpush.bf16.msra.mxu0 0
    %586 = vmatpush.bf16.msra.mxu0 0
    %587 = vmatpush.bf16.msra.mxu0 0
    %588 = vmatpush.bf16.msra.mxu0 %v579
    %589 = vmatmul.bf16.gmra.mxu0 %v575
    %v590 = vpop.f32.mrf.mxu0
    %v591 = vadd.f32 0.0, %v590
    %v592 = vpop.f32.mrf.mxu0
    %593 = vdwg.mxu0
    %594 = vrot.lane.b32.xlu0 %v206, 64
    %v595 = vpop.permute.xlu0 %594
    %v597 = vsel %vm184, %v565, 0
    %v600 = vsel %vm577, %v595, 0
    %602 = vmatpush.bf16.msra.mxu0 0
    %603 = vmatpush.bf16.msra.mxu0 0
    %604 = vmatpush.bf16.msra.mxu0 0
    %605 = vmatpush.bf16.msra.mxu0 0
    %606 = vmatpush.bf16.msra.mxu0 0
    %607 = vmatpush.bf16.msra.mxu0 0
    %608 = vmatpush.bf16.msra.mxu0 0
    %609 = vmatpush.bf16.msra.mxu0 %v600
    %610 = vmatmul.bf16.gmra.mxu0 %v597
    %v611 = vpop.f32.mrf.mxu0
    %v612 = vadd.f32 0.0, %v611
    %v613 = vpop.f32.mrf.mxu0
    %614 = vdwg.mxu0
    %615 = vrot.lane.b32.xlu0 %v230, 64
    %v616 = vpop.permute.xlu0 %615
    %v618 = vsel %vm184, %v566, 0
    %v621 = vsel %vm577, %v616, 0
    %623 = vmatpush.bf16.msra.mxu0 0
    %624 = vmatpush.bf16.msra.mxu0 0
    %625 = vmatpush.bf16.msra.mxu0 0
    %626 = vmatpush.bf16.msra.mxu0 0
    %627 = vmatpush.bf16.msra.mxu0 0
    %628 = vmatpush.bf16.msra.mxu0 0
    %629 = vmatpush.bf16.msra.mxu0 0
    %630 = vmatpush.bf16.msra.mxu0 %v621
    %631 = vmatmul.bf16.gmra.mxu0 %v618
    %v632 = vpop.f32.mrf.mxu0
    %v633 = vadd.f32 0.0, %v632
    %v634 = vpop.f32.mrf.mxu0
    %635 = vdwg.mxu0
    %636 = vrot.lane.b32.xlu0 %v254, 64
    %v637 = vpop.permute.xlu0 %636
    %v639 = vsel %vm184, %v567, 0
    %v642 = vsel %vm577, %v637, 0
    %644 = vmatpush.bf16.msra.mxu0 0
    %645 = vmatpush.bf16.msra.mxu0 0
    %646 = vmatpush.bf16.msra.mxu0 0
    %647 = vmatpush.bf16.msra.mxu0 0
    %648 = vmatpush.bf16.msra.mxu0 0
    %649 = vmatpush.bf16.msra.mxu0 0
    %650 = vmatpush.bf16.msra.mxu0 0
    %651 = vmatpush.bf16.msra.mxu0 %v642
    %652 = vmatmul.bf16.gmra.mxu0 %v639
    %v653 = vpop.f32.mrf.mxu0
    %v654 = vadd.f32 0.0, %v653
    %v655 = vpop.f32.mrf.mxu0
    %656 = vdwg.mxu0
    %657 = vrot.lane.b32.xlu0 %v278, 64
    %v658 = vpop.permute.xlu0 %657
    %v660 = vsel %vm184, %v568, 0
    %v663 = vsel %vm577, %v658, 0
    %665 = vmatpush.bf16.msra.mxu0 0
    %666 = vmatpush.bf16.msra.mxu0 0
    %667 = vmatpush.bf16.msra.mxu0 0
    %668 = vmatpush.bf16.msra.mxu0 0
    %669 = vmatpush.bf16.msra.mxu0 0
    %670 = vmatpush.bf16.msra.mxu0 0
    %671 = vmatpush.bf16.msra.mxu0 0
    %672 = vmatpush.bf16.msra.mxu0 %v663
    %673 = vmatmul.bf16.gmra.mxu0 %v660
    %v674 = vpop.f32.mrf.mxu0
    %v675 = vadd.f32 0.0, %v674
    %v676 = vpop.f32.mrf.mxu0
    %677 = vdwg.mxu0
    %678 = vrot.lane.b32.xlu0 %v302, 64
    %v679 = vpop.permute.xlu0 %678
    %v681 = vsel %vm184, %v569, 0
    %v684 = vsel %vm577, %v679, 0
    %686 = vmatpush.bf16.msra.mxu0 0
    %687 = vmatpush.bf16.msra.mxu0 0
    %688 = vmatpush.bf16.msra.mxu0 0
    %689 = vmatpush.bf16.msra.mxu0 0
    %690 = vmatpush.bf16.msra.mxu0 0
    %691 = vmatpush.bf16.msra.mxu0 0
    %692 = vmatpush.bf16.msra.mxu0 0
    %693 = vmatpush.bf16.msra.mxu0 %v684
    %694 = vmatmul.bf16.gmra.mxu0 %v681
    %v695 = vpop.f32.mrf.mxu0
    %v696 = vadd.f32 0.0, %v695
    %v697 = vpop.f32.mrf.mxu0
    %698 = vdwg.mxu0
    %699 = vrot.lane.b32.xlu0 %v326, 64
    %v700 = vpop.permute.xlu0 %699
    %v702 = vsel %vm184, %v570, 0
    %v705 = vsel %vm577, %v700, 0
    %707 = vmatpush.bf16.msra.mxu0 0
    %708 = vmatpush.bf16.msra.mxu0 0
    %709 = vmatpush.bf16.msra.mxu0 0
    %710 = vmatpush.bf16.msra.mxu0 0
    %711 = vmatpush.bf16.msra.mxu0 0
    %712 = vmatpush.bf16.msra.mxu0 0
    %713 = vmatpush.bf16.msra.mxu0 0
    %714 = vmatpush.bf16.msra.mxu0 %v705
    %715 = vmatmul.bf16.gmra.mxu0 %v702
    %v716 = vpop.f32.mrf.mxu0
    %v717 = vadd.f32 0.0, %v716
    %v718 = vpop.f32.mrf.mxu0
    %719 = vdwg.mxu0
    %720 = vrot.lane.b32.xlu0 %v350, 64
    %v721 = vpop.permute.xlu0 %720
    %v723 = vsel %vm184, %v571, 0
    %v726 = vsel %vm577, %v721, 0
    %728 = vmatpush.bf16.msra.mxu0 0
    %729 = vmatpush.bf16.msra.mxu0 0
    %730 = vmatpush.bf16.msra.mxu0 0
    %731 = vmatpush.bf16.msra.mxu0 0
    %732 = vmatpush.bf16.msra.mxu0 0
    %733 = vmatpush.bf16.msra.mxu0 0
    %734 = vmatpush.bf16.msra.mxu0 0
    %735 = vmatpush.bf16.msra.mxu0 %v726
    %736 = vmatmul.bf16.gmra.mxu0 %v723
    %v737 = vpop.f32.mrf.mxu0
    %v738 = vadd.f32 0.0, %v737
    %v739 = vpop.f32.mrf.mxu0
    %740 = vdwg.mxu0
    %743 = vrot.lane.b32.xlu0 %v633, 8
    %v744 = vpop.permute.xlu0 %743
    %745 = vrot.lane.b32.xlu0 %v654, 8
    %v746 = vpop.permute.xlu0 %745
    %751 = vrot.lane.b32.xlu0 %v675, 16
    %v752 = vpop.permute.xlu0 %751
    %753 = vrot.lane.b32.xlu0 %v696, 16
    %v754 = vpop.permute.xlu0 %753
    %759 = vrot.lane.b32.xlu0 %v717, 24
    %v760 = vpop.permute.xlu0 %759
    %761 = vrot.lane.b32.xlu0 %v738, 24
    %v762 = vpop.permute.xlu0 %761
    %v765 = vsel %vm184, %v591, %v744
    %v766 = vsel %vm184, %v612, %v746
    %vm767 = vcmask 130048
    %v768 = vsel %vm767, %v765, %v752
    %v769 = vsel %vm767, %v766, %v754
    %vm770 = vcmask 195584
    %v771 = vsel %vm770, %v768, %v760
    %v772 = vsel %vm770, %v769, %v762
    %v773 = vpack.c.bf16 %v772, %v771
    %v778 = vunpack.c.l.b16 %v30
    %v779 = vunpack.c.l.b16 %v31
    %v780 = vunpack.c.l.b16 %v32
    %v781 = vunpack.c.l.b16 %v33
    %v782 = vpack.c.b16 %v779, %v778
    %v783 = vpack.c.b16 %v781, %v780
    %v787 = vsel %vm62, %v773, 0
    %789 = vmatpush.bf16.msra.mxu0 0
    %790 = vmatpush.bf16.msra.mxu0 0
    %791 = vmatpush.bf16.msra.mxu0 0
    %792 = vmatpush.bf16.msra.mxu0 0
    %793 = vmatpush.bf16.msra.mxu0 0
    %794 = vmatpush.bf16.msra.mxu0 0
    %795 = vmatpush.bf16.msra.mxu0 %v783
    %796 = vmatpush.bf16.msra.mxu0 %v782
    %797 = vmatmul.bf16.gmra.mxu0 %v787
    %v798 = vpop.f32.mrf.mxu0
    %v799 = vadd.f32 0.0, %v798
    %v800 = vpop.f32.mrf.mxu0
    %v801 = vadd.f32 0.0, %v800
    %802 = vdwg.mxu0
    %v803 = vadd.f32 %v24, %v799
    %v804 = vadd.f32 %v25, %v801
    %v805 = vperm.slane %v57, 0
    %v806 = vadd.f32 %v803, %v805
    %v807 = vadd.f32 %v804, %v805
    %v808 = vsel %vm62, %v806, 0.0
    %809 = vadd.xlane.f32.xlu0 %v808
    %v810 = vpop.xlane.xlu0 %809
    %v811 = vsel %vm62, %v807, 0.0
    %812 = vadd.xlane.f32.xlu0 %v811
    %v813 = vpop.xlane.xlu0 %812
    %v814 = vmul.f32 %v810, %v75
    %v815 = vmul.f32 %v813, %v75
    %v816 = vsub.f32 %v806, %v814
    %v817 = vsub.f32 %v807, %v815
    %v818 = vmul.f32 %v816, %v816
    %v819 = vmul.f32 %v817, %v817
    %v820 = vsel %vm62, %v818, 0.0
    %821 = vadd.xlane.f32.xlu0 %v820
    %v822 = vpop.xlane.xlu0 %821
    %v823 = vsel %vm62, %v819, 0.0
    %824 = vadd.xlane.f32.xlu0 %v823
    %v825 = vpop.xlane.xlu0 %824
    %v826 = vmul.f32 %v822, %v75
    %v827 = vmul.f32 %v825, %v75
    %v828 = vadd.f32 %v826, 1e-05
    %v829 = vadd.f32 %v827, 1e-05
    %v830 = vrsqrt.pop %v828
    %v831 = vmul.f32 %v830, %v828
    %v832 = vmul.f32 %v831, %v830
    %v833 = vmul.f32 0.5, %v832
    %v834 = vsub.f32 1.5, %v833
    %v835 = vmul.f32 %v830, %v834
    %vm836 = vweird.f32 %v828
    %vm837 = vweird.f32 %v830
    %vm838 = vmor %vm836, %vm837
    %v839 = vsel %vm838, %v830, %v835
    %v840 = vrsqrt.pop %v829
    %v841 = vmul.f32 %v840, %v829
    %v842 = vmul.f32 %v841, %v840
    %v843 = vmul.f32 0.5, %v842
    %v844 = vsub.f32 1.5, %v843
    %v845 = vmul.f32 %v840, %v844
    %vm846 = vweird.f32 %v829
    %vm847 = vweird.f32 %v840
    %vm848 = vmor %vm846, %vm847
    %v849 = vsel %vm848, %v840, %v845
    %v850 = vmul.f32 %v816, %v839
    %v851 = vmul.f32 %v817, %v849
    %v852 = vperm.slane %v58, 0
    %v853 = vmul.f32 %v850, %v852
    %v854 = vmul.f32 %v851, %v852
    %v855 = vperm.slane %v59, 0
    %v856 = vadd.f32 %v853, %v855
    %v857 = vadd.f32 %v854, %v855
    %v858 = vpack.c.bf16 %v857, %v856
    %v859 = vperm.slane %v60, 0
    %v864 = vunpack.c.l.b16 %v34
    %v865 = vunpack.c.l.b16 %v35
    %v866 = vunpack.c.l.b16 %v36
    %v867 = vunpack.c.l.b16 %v37
    %v868 = vpack.c.b16 %v865, %v864
    %v869 = vpack.c.b16 %v867, %v866
    %v873 = vsel %vm62, %v858, 0
    %875 = vmatpush.bf16.msra.mxu0 0
    %876 = vmatpush.bf16.msra.mxu0 0
    %877 = vmatpush.bf16.msra.mxu0 0
    %878 = vmatpush.bf16.msra.mxu0 0
    %879 = vmatpush.bf16.msra.mxu0 0
    %880 = vmatpush.bf16.msra.mxu0 0
    %881 = vmatpush.bf16.msra.mxu0 %v869
    %882 = vmatpush.bf16.msra.mxu0 %v868
    %883 = vmatmul.bf16.gmra.mxu0 %v873
    %v884 = vpop.f32.mrf.mxu0
    %v885 = vadd.f32 %v859, %v884
    %v886 = vpop.f32.mrf.mxu0
    %v887 = vadd.f32 %v859, %v886
    %888 = vdwg.mxu0
    %v889 = vmul.f32 %v885, 0.5
    %v890 = vmul.f32 %v887, 0.5
    %v891 = vmul.f32 %v885, %v885
    %v892 = vmul.f32 %v887, %v887
    %v893 = vmul.f32 %v891, %v885
    %v894 = vmul.f32 %v892, %v887
    %v895 = vmul.f32 %v893, 0.044715
    %v896 = vmul.f32 %v894, 0.044715
    %v897 = vadd.f32 %v885, %v895
    %v898 = vadd.f32 %v887, %v896
    %v899 = vmul.f32 %v897, 0.7978846
    %v900 = vmul.f32 %v898, 0.7978846
    %v901 = vtanh.pop %v899
    %v902 = vtanh.pop %v900
    %v903 = vadd.f32 %v901, 1.0
    %v904 = vadd.f32 %v902, 1.0
    %v905 = vmul.f32 %v889, %v903
    %v906 = vmul.f32 %v890, %v904
    %v907 = vpack.c.bf16 %v906, %v905
    %v924 = vunpack.c.l.b16 %v38
    %v925 = vunpack.c.l.b16 %v39
    %v926 = vunpack.c.l.b16 %v40
    %v927 = vunpack.c.l.b16 %v41
    %v928 = vunpack.c.l.b16 %v42
    %v929 = vunpack.c.l.b16 %v43
    %v930 = vunpack.c.l.b16 %v44
    %v931 = vunpack.c.l.b16 %v45
    %v932 = vunpack.c.l.b16 %v46
    %v933 = vunpack.c.l.b16 %v47
    %v934 = vunpack.c.l.b16 %v48
    %v935 = vunpack.c.l.b16 %v49
    %v936 = vunpack.c.l.b16 %v50
    %v937 = vunpack.c.l.b16 %v51
    %v938 = vunpack.c.l.b16 %v52
    %v939 = vunpack.c.l.b16 %v53
    %v940 = vpack.c.b16 %v925, %v924
    %v941 = vpack.c.b16 %v927, %v926
    %v942 = vpack.c.b16 %v929, %v928
    %v943 = vpack.c.b16 %v931, %v930
    %v944 = vpack.c.b16 %v933, %v932
    %v945 = vpack.c.b16 %v935, %v934
    %v946 = vpack.c.b16 %v937, %v936
    %v947 = vpack.c.b16 %v939, %v938
    %956 = vmatpush.bf16.msra.mxu0 %v947
    %957 = vmatpush.bf16.msra.mxu0 %v946
    %958 = vmatpush.bf16.msra.mxu0 %v945
    %959 = vmatpush.bf16.msra.mxu0 %v944
    %960 = vmatpush.bf16.msra.mxu0 %v943
    %961 = vmatpush.bf16.msra.mxu0 %v942
    %962 = vmatpush.bf16.msra.mxu0 %v941
    %963 = vmatpush.bf16.msra.mxu0 %v940
    %964 = vmatmul.bf16.gmra.mxu0 %v907
    %v965 = vpop.f32.mrf.mxu0
    %v966 = vadd.f32 0.0, %v965
    %v967 = vpop.f32.mrf.mxu0
    %v968 = vadd.f32 0.0, %v967
    %969 = vdwg.mxu0
    %v970 = vadd.f32 %v806, %v966
    %v971 = vadd.f32 %v807, %v968
    %v972 = vperm.slane %v61, 0
    %v973 = vadd.f32 %v970, %v972
    %v974 = vadd.f32 %v971, %v972
    %v975 = vld [vmem:[%s1 + $0x70] sm:$0xf]
    %v976 = vld [vmem:[%s1 + $0x74] sm:$0xf]
    %v977 = vld [vmem:[%s1 + $0x78] sm:$0xf]
    %v978 = vld [vmem:[%s1 + $0x7c] sm:$0xf]
    %v979 = vld [vmem:[%s1 + $0x80] sm:$0xf]
    %v980 = vld [vmem:[%s1 + $0x84] sm:$0xf]
    %v981 = vld [vmem:[%s1 + $0x88] sm:$0xf]
    %v982 = vld [vmem:[%s1 + $0x8c] sm:$0xf]
    %v983 = vld [vmem:[%s1 + $0x90] sm:$0xf]
    %v984 = vld [vmem:[%s1 + $0x94] sm:$0xf]
    %v985 = vld [vmem:[%s1 + $0x98] sm:$0xf]
    %v986 = vld [vmem:[%s1 + $0x9c] sm:$0xf]
    %v987 = vld [vmem:[%s1 + $0xa0] sm:$0xf]
    %v988 = vld [vmem:[%s1 + $0xa4] sm:$0xf]
    %v989 = vld [vmem:[%s1 + $0xa8] sm:$0xf]
    %v990 = vld [vmem:[%s1 + $0xac] sm:$0xf]
    %v991 = vld [vmem:[%s1 + $0xb0] sm:$0xf]
    %v992 = vld [vmem:[%s1 + $0xb4] sm:$0xf]
    %v993 = vld [vmem:[%s1 + $0xb8] sm:$0xf]
    %v994 = vld [vmem:[%s1 + $0xbc] sm:$0xf]
    %v995 = vld [vmem:[%s1 + $0xc0] sm:$0xf]
    %v996 = vld [vmem:[%s1 + $0xc4] sm:$0xf]
    %v997 = vld [vmem:[%s1 + $0xc8] sm:$0xf]
    %v998 = vld [vmem:[%s1 + $0xcc] sm:$0xf]
    %v999 = vld [vmem:[%s1 + $0xd0] sm:$0xf]
    %v1000 = vld [vmem:[%s1 + $0xd4] sm:$0xf]
    %v1001 = vld [vmem:[%s1 + $0xd8] sm:$0xf]
    %v1002 = vld [vmem:[%s1 + $0xdc] sm:$0xf]
    %v1003 = vld [vmem:[%s2 + $0x8] sm:$0x1]
    %v1004 = vld [vmem:[%s2 + $0x9] sm:$0x1]
    %v1005 = vld [vmem:[%s2 + $0xa] sm:$0x1]
    %v1006 = vld [vmem:[%s2 + $0xb] sm:$0x1]
    %v1007 = vld [vmem:[%s2 + $0xc] sm:$0x1]
    %v1008 = vld [vmem:[%s2 + $0xd] sm:$0x1]
    %v1009 = vld [vmem:[%s2 + $0xe] sm:$0x1]
    %v1010 = vld [vmem:[%s2 + $0xf] sm:$0x1]
    %v1011 = vsel %vm62, %v973, 0.0
    %1012 = vadd.xlane.f32.xlu0 %v1011
    %v1013 = vpop.xlane.xlu0 %1012
    %v1014 = vsel %vm62, %v974, 0.0
    %1015 = vadd.xlane.f32.xlu0 %v1014
    %v1016 = vpop.xlane.xlu0 %1015
    %v1017 = vmul.f32 %v1013, %v75
    %v1018 = vmul.f32 %v1016, %v75
    %v1019 = vsub.f32 %v973, %v1017
    %v1020 = vsub.f32 %v974, %v1018
    %v1021 = vmul.f32 %v1019, %v1019
    %v1022 = vmul.f32 %v1020, %v1020
    %v1023 = vsel %vm62, %v1021, 0.0
    %1024 = vadd.xlane.f32.xlu0 %v1023
    %v1025 = vpop.xlane.xlu0 %1024
    %v1026 = vsel %vm62, %v1022, 0.0
    %1027 = vadd.xlane.f32.xlu0 %v1026
    %v1028 = vpop.xlane.xlu0 %1027
    %v1029 = vmul.f32 %v1025, %v75
    %v1030 = vmul.f32 %v1028, %v75
    %v1031 = vadd.f32 %v1029, 1e-05
    %v1032 = vadd.f32 %v1030, 1e-05
    %v1033 = vrsqrt.pop %v1031
    %v1034 = vmul.f32 %v1033, %v1031
    %v1035 = vmul.f32 %v1034, %v1033
    %v1036 = vmul.f32 0.5, %v1035
    %v1037 = vsub.f32 1.5, %v1036
    %v1038 = vmul.f32 %v1033, %v1037
    %vm1039 = vweird.f32 %v1031
    %vm1040 = vweird.f32 %v1033
    %vm1041 = vmor %vm1039, %vm1040
    %v1042 = vsel %vm1041, %v1033, %v1038
    %v1043 = vrsqrt.pop %v1032
    %v1044 = vmul.f32 %v1043, %v1032
    %v1045 = vmul.f32 %v1044, %v1043
    %v1046 = vmul.f32 0.5, %v1045
    %v1047 = vsub.f32 1.5, %v1046
    %v1048 = vmul.f32 %v1043, %v1047
    %vm1049 = vweird.f32 %v1032
    %vm1050 = vweird.f32 %v1043
    %vm1051 = vmor %vm1049, %vm1050
    %v1052 = vsel %vm1051, %v1043, %v1048
    %v1053 = vmul.f32 %v1019, %v1042
    %v1054 = vmul.f32 %v1020, %v1052
    %v1055 = vperm.slane %v1003, 0
    %v1056 = vmul.f32 %v1053, %v1055
    %v1057 = vmul.f32 %v1054, %v1055
    %v1058 = vperm.slane %v1004, 0
    %v1059 = vadd.f32 %v1056, %v1058
    %v1060 = vadd.f32 %v1057, %v1058
    %v1061 = vpack.c.bf16 %v1060, %v1059
    %v1062 = vperm.slane %v1005, 0
    %v1067 = vunpack.c.l.b16 %v975
    %v1068 = vunpack.c.l.b16 %v976
    %v1069 = vunpack.c.l.b16 %v977
    %v1070 = vunpack.c.l.b16 %v978
    %v1071 = vpack.c.b16 %v1068, %v1067
    %v1072 = vpack.c.b16 %v1070, %v1069
    %v1076 = vsel %vm62, %v1061, 0
    %1078 = vmatpush.bf16.msra.mxu0 0
    %1079 = vmatpush.bf16.msra.mxu0 0
    %1080 = vmatpush.bf16.msra.mxu0 0
    %1081 = vmatpush.bf16.msra.mxu0 0
    %1082 = vmatpush.bf16.msra.mxu0 0
    %1083 = vmatpush.bf16.msra.mxu0 0
    %1084 = vmatpush.bf16.msra.mxu0 %v1072
    %1085 = vmatpush.bf16.msra.mxu0 %v1071
    %1086 = vmatmul.bf16.gmra.mxu0 %v1076
    %v1087 = vpop.f32.mrf.mxu0
    %v1088 = vadd.f32 %v1062, %v1087
    %v1089 = vpop.f32.mrf.mxu0
    %v1090 = vadd.f32 %v1062, %v1089
    %1091 = vdwg.mxu0
    %1094 = vrot.lane.b32.xlu0 %v1088, 120
    %v1095 = vpop.permute.xlu0 %1094
    %1096 = vrot.lane.b32.xlu0 %v1090, 120
    %v1097 = vpop.permute.xlu0 %1096
    %1100 = vrot.lane.b32.xlu0 %v1088, 112
    %v1101 = vpop.permute.xlu0 %1100
    %1102 = vrot.lane.b32.xlu0 %v1090, 112
    %v1103 = vpop.permute.xlu0 %1102
    %1106 = vrot.lane.b32.xlu0 %v1088, 104
    %v1107 = vpop.permute.xlu0 %1106
    %1108 = vrot.lane.b32.xlu0 %v1090, 104
    %v1109 = vpop.permute.xlu0 %1108
    %v1112 = vpack.c.bf16 %v1088, %v1088
    %v1113 = vpack.c.bf16 %v1090, %v1090
    %v1114 = vpack.c.bf16 %v1095, %v1095
    %v1115 = vpack.c.bf16 %v1097, %v1097
    %v1116 = vpack.c.bf16 %v1101, %v1101
    %v1117 = vpack.c.bf16 %v1103, %v1103
    %v1118 = vpack.c.bf16 %v1107, %v1107
    %v1119 = vpack.c.bf16 %v1109, %v1109
    %v1121 = vunpack.c.l.b16 %v1112
    %v1122 = vpack.c.b16 %v1121, %v1121
    %1123 = vrot.lane.b32.xlu0 %v1122, 96
    %v1124 = vpop.permute.xlu0 %1123
    %v1126 = vsel %vm184, %v1112, 0
    %v1129 = vsel %vm184, %v1124, 0
    %1131 = vmatpush.bf16.xpose.msra.mxu0 0
    %1132 = vmatpush.bf16.xpose.msra.mxu0 0
    %1133 = vmatpush.bf16.xpose.msra.mxu0 0
    %1134 = vmatpush.bf16.xpose.msra.mxu0 0
    %1135 = vmatpush.bf16.xpose.msra.mxu0 0
    %1136 = vmatpush.bf16.xpose.msra.mxu0 0
    %1137 = vmatpush.bf16.xpose.msra.mxu0 0
    %1138 = vmatpush.bf16.xpose.msra.mxu0 %v1129
    %1139 = vmatmul.bf16.gmra.mxu0 %v1126
    %v1140 = vpop.f32.mrf.mxu0
    %v1141 = vadd.f32 %v23, %v1140
    %v1142 = vpop.f32.mrf.mxu0
    %1143 = vdwg.mxu0
    %v1145 = vunpack.c.l.b16 %v1113
    %v1146 = vpack.c.b16 %v1145, %v1145
    %1147 = vrot.lane.b32.xlu0 %v1146, 96
    %v1148 = vpop.permute.xlu0 %1147
    %v1150 = vsel %vm184, %v1113, 0
    %v1153 = vsel %vm184, %v1148, 0
    %1155 = vmatpush.bf16.xpose.msra.mxu0 0
    %1156 = vmatpush.bf16.xpose.msra.mxu0 0
    %1157 = vmatpush.bf16.xpose.msra.mxu0 0
    %1158 = vmatpush.bf16.xpose.msra.mxu0 0
    %1159 = vmatpush.bf16.xpose.msra.mxu0 0
    %1160 = vmatpush.bf16.xpose.msra.mxu0 0
    %1161 = vmatpush.bf16.xpose.msra.mxu0 0
    %1162 = vmatpush.bf16.xpose.msra.mxu0 %v1153
    %1163 = vmatmul.bf16.gmra.mxu0 %v1150
    %v1164 = vpop.f32.mrf.mxu0
    %v1165 = vadd.f32 %v23, %v1164
    %v1166 = vpop.f32.mrf.mxu0
    %1167 = vdwg.mxu0
    %v1169 = vunpack.c.l.b16 %v1114
    %v1170 = vpack.c.b16 %v1169, %v1169
    %1171 = vrot.lane.b32.xlu0 %v1170, 96
    %v1172 = vpop.permute.xlu0 %1171
    %v1174 = vsel %vm184, %v1114, 0
    %v1177 = vsel %vm184, %v1172, 0
    %1179 = vmatpush.bf16.xpose.msra.mxu0 0
    %1180 = vmatpush.bf16.xpose.msra.mxu0 0
    %1181 = vmatpush.bf16.xpose.msra.mxu0 0
    %1182 = vmatpush.bf16.xpose.msra.mxu0 0
    %1183 = vmatpush.bf16.xpose.msra.mxu0 0
    %1184 = vmatpush.bf16.xpose.msra.mxu0 0
    %1185 = vmatpush.bf16.xpose.msra.mxu0 0
    %1186 = vmatpush.bf16.xpose.msra.mxu0 %v1177
    %1187 = vmatmul.bf16.gmra.mxu0 %v1174
    %v1188 = vpop.f32.mrf.mxu0
    %v1189 = vadd.f32 %v23, %v1188
    %v1190 = vpop.f32.mrf.mxu0
    %1191 = vdwg.mxu0
    %v1193 = vunpack.c.l.b16 %v1115
    %v1194 = vpack.c.b16 %v1193, %v1193
    %1195 = vrot.lane.b32.xlu0 %v1194, 96
    %v1196 = vpop.permute.xlu0 %1195
    %v1198 = vsel %vm184, %v1115, 0
    %v1201 = vsel %vm184, %v1196, 0
    %1203 = vmatpush.bf16.xpose.msra.mxu0 0
    %1204 = vmatpush.bf16.xpose.msra.mxu0 0
    %1205 = vmatpush.bf16.xpose.msra.mxu0 0
    %1206 = vmatpush.bf16.xpose.msra.mxu0 0
    %1207 = vmatpush.bf16.xpose.msra.mxu0 0
    %1208 = vmatpush.bf16.xpose.msra.mxu0 0
    %1209 = vmatpush.bf16.xpose.msra.mxu0 0
    %1210 = vmatpush.bf16.xpose.msra.mxu0 %v1201
    %1211 = vmatmul.bf16.gmra.mxu0 %v1198
    %v1212 = vpop.f32.mrf.mxu0
    %v1213 = vadd.f32 %v23, %v1212
    %v1214 = vpop.f32.mrf.mxu0
    %1215 = vdwg.mxu0
    %v1217 = vunpack.c.l.b16 %v1116
    %v1218 = vpack.c.b16 %v1217, %v1217
    %1219 = vrot.lane.b32.xlu0 %v1218, 96
    %v1220 = vpop.permute.xlu0 %1219
    %v1222 = vsel %vm184, %v1116, 0
    %v1225 = vsel %vm184, %v1220, 0
    %1227 = vmatpush.bf16.xpose.msra.mxu0 0
    %1228 = vmatpush.bf16.xpose.msra.mxu0 0
    %1229 = vmatpush.bf16.xpose.msra.mxu0 0
    %1230 = vmatpush.bf16.xpose.msra.mxu0 0
    %1231 = vmatpush.bf16.xpose.msra.mxu0 0
    %1232 = vmatpush.bf16.xpose.msra.mxu0 0
    %1233 = vmatpush.bf16.xpose.msra.mxu0 0
    %1234 = vmatpush.bf16.xpose.msra.mxu0 %v1225
    %1235 = vmatmul.bf16.gmra.mxu0 %v1222
    %v1236 = vpop.f32.mrf.mxu0
    %v1237 = vadd.f32 %v23, %v1236
    %v1238 = vpop.f32.mrf.mxu0
    %1239 = vdwg.mxu0
    %v1241 = vunpack.c.l.b16 %v1117
    %v1242 = vpack.c.b16 %v1241, %v1241
    %1243 = vrot.lane.b32.xlu0 %v1242, 96
    %v1244 = vpop.permute.xlu0 %1243
    %v1246 = vsel %vm184, %v1117, 0
    %v1249 = vsel %vm184, %v1244, 0
    %1251 = vmatpush.bf16.xpose.msra.mxu0 0
    %1252 = vmatpush.bf16.xpose.msra.mxu0 0
    %1253 = vmatpush.bf16.xpose.msra.mxu0 0
    %1254 = vmatpush.bf16.xpose.msra.mxu0 0
    %1255 = vmatpush.bf16.xpose.msra.mxu0 0
    %1256 = vmatpush.bf16.xpose.msra.mxu0 0
    %1257 = vmatpush.bf16.xpose.msra.mxu0 0
    %1258 = vmatpush.bf16.xpose.msra.mxu0 %v1249
    %1259 = vmatmul.bf16.gmra.mxu0 %v1246
    %v1260 = vpop.f32.mrf.mxu0
    %v1261 = vadd.f32 %v23, %v1260
    %v1262 = vpop.f32.mrf.mxu0
    %1263 = vdwg.mxu0
    %v1265 = vunpack.c.l.b16 %v1118
    %v1266 = vpack.c.b16 %v1265, %v1265
    %1267 = vrot.lane.b32.xlu0 %v1266, 96
    %v1268 = vpop.permute.xlu0 %1267
    %v1270 = vsel %vm184, %v1118, 0
    %v1273 = vsel %vm184, %v1268, 0
    %1275 = vmatpush.bf16.xpose.msra.mxu0 0
    %1276 = vmatpush.bf16.xpose.msra.mxu0 0
    %1277 = vmatpush.bf16.xpose.msra.mxu0 0
    %1278 = vmatpush.bf16.xpose.msra.mxu0 0
    %1279 = vmatpush.bf16.xpose.msra.mxu0 0
    %1280 = vmatpush.bf16.xpose.msra.mxu0 0
    %1281 = vmatpush.bf16.xpose.msra.mxu0 0
    %1282 = vmatpush.bf16.xpose.msra.mxu0 %v1273
    %1283 = vmatmul.bf16.gmra.mxu0 %v1270
    %v1284 = vpop.f32.mrf.mxu0
    %v1285 = vadd.f32 %v23, %v1284
    %v1286 = vpop.f32.mrf.mxu0
    %1287 = vdwg.mxu0
    %v1289 = vunpack.c.l.b16 %v1119
    %v1290 = vpack.c.b16 %v1289, %v1289
    %1291 = vrot.lane.b32.xlu0 %v1290, 96
    %v1292 = vpop.permute.xlu0 %1291
    %v1294 = vsel %vm184, %v1119, 0
    %v1297 = vsel %vm184, %v1292, 0
    %1299 = vmatpush.bf16.xpose.msra.mxu0 0
    %1300 = vmatpush.bf16.xpose.msra.mxu0 0
    %1301 = vmatpush.bf16.xpose.msra.mxu0 0
    %1302 = vmatpush.bf16.xpose.msra.mxu0 0
    %1303 = vmatpush.bf16.xpose.msra.mxu0 0
    %1304 = vmatpush.bf16.xpose.msra.mxu0 0
    %1305 = vmatpush.bf16.xpose.msra.mxu0 0
    %1306 = vmatpush.bf16.xpose.msra.mxu0 %v1297
    %1307 = vmatmul.bf16.gmra.mxu0 %v1294
    %v1308 = vpop.f32.mrf.mxu0
    %v1309 = vadd.f32 %v23, %v1308
    %v1310 = vpop.f32.mrf.mxu0
    %1311 = vdwg.mxu0
    %v1312 = vsel %vm184, %v1141, -inf
    %1313 = vmax.xlane.f32.xlu0 %v1312
    %v1314 = vpop.xlane.xlu0 %1313
    %v1315 = vsel %vm184, %v1165, -inf
    %1316 = vmax.xlane.f32.xlu0 %v1315
    %v1317 = vpop.xlane.xlu0 %1316
    %v1318 = vsel %vm184, %v1189, -inf
    %1319 = vmax.xlane.f32.xlu0 %v1318
    %v1320 = vpop.xlane.xlu0 %1319
    %v1321 = vsel %vm184, %v1213, -inf
    %1322 = vmax.xlane.f32.xlu0 %v1321
    %v1323 = vpop.xlane.xlu0 %1322
    %v1324 = vsel %vm184, %v1237, -inf
    %1325 = vmax.xlane.f32.xlu0 %v1324
    %v1326 = vpop.xlane.xlu0 %1325
    %v1327 = vsel %vm184, %v1261, -inf
    %1328 = vmax.xlane.f32.xlu0 %v1327
    %v1329 = vpop.xlane.xlu0 %1328
    %v1330 = vsel %vm184, %v1285, -inf
    %1331 = vmax.xlane.f32.xlu0 %v1330
    %v1332 = vpop.xlane.xlu0 %1331
    %v1333 = vsel %vm184, %v1309, -inf
    %1334 = vmax.xlane.f32.xlu0 %v1333
    %v1335 = vpop.xlane.xlu0 %1334
    %v1336 = vsub.f32 %v1141, %v1314
    %v1337 = vsub.f32 %v1165, %v1317
    %v1338 = vsub.f32 %v1189, %v1320
    %v1339 = vsub.f32 %v1213, %v1323
    %v1340 = vsub.f32 %v1237, %v1326
    %v1341 = vsub.f32 %v1261, %v1329
    %v1342 = vsub.f32 %v1285, %v1332
    %v1343 = vsub.f32 %v1309, %v1335
    %v1344 = vmul.f32 %v1336, 1.442695
    %v1345 = vpow.pop %v1344
    %v1346 = vmul.f32 %v1337, 1.442695
    %v1347 = vpow.pop %v1346
    %v1348 = vmul.f32 %v1338, 1.442695
    %v1349 = vpow.pop %v1348
    %v1350 = vmul.f32 %v1339, 1.442695
    %v1351 = vpow.pop %v1350
    %v1352 = vmul.f32 %v1340, 1.442695
    %v1353 = vpow.pop %v1352
    %v1354 = vmul.f32 %v1341, 1.442695
    %v1355 = vpow.pop %v1354
    %v1356 = vmul.f32 %v1342, 1.442695
    %v1357 = vpow.pop %v1356
    %v1358 = vmul.f32 %v1343, 1.442695
    %v1359 = vpow.pop %v1358
    %v1360 = vsel %vm184, %v1345, 0.0
    %1361 = vadd.xlane.f32.xlu0 %v1360
    %v1362 = vpop.xlane.xlu0 %1361
    %v1363 = vsel %vm184, %v1347, 0.0
    %1364 = vadd.xlane.f32.xlu0 %v1363
    %v1365 = vpop.xlane.xlu0 %1364
    %v1366 = vsel %vm184, %v1349, 0.0
    %1367 = vadd.xlane.f32.xlu0 %v1366
    %v1368 = vpop.xlane.xlu0 %1367
    %v1369 = vsel %vm184, %v1351, 0.0
    %1370 = vadd.xlane.f32.xlu0 %v1369
    %v1371 = vpop.xlane.xlu0 %1370
    %v1372 = vsel %vm184, %v1353, 0.0
    %1373 = vadd.xlane.f32.xlu0 %v1372
    %v1374 = vpop.xlane.xlu0 %1373
    %v1375 = vsel %vm184, %v1355, 0.0
    %1376 = vadd.xlane.f32.xlu0 %v1375
    %v1377 = vpop.xlane.xlu0 %1376
    %v1378 = vsel %vm184, %v1357, 0.0
    %1379 = vadd.xlane.f32.xlu0 %v1378
    %v1380 = vpop.xlane.xlu0 %1379
    %v1381 = vsel %vm184, %v1359, 0.0
    %1382 = vadd.xlane.f32.xlu0 %v1381
    %v1383 = vpop.xlane.xlu0 %1382
    %v1384 = vrcp.pop %v1362
    %v1385 = vmul.f32 %v1362, %v1384
    %v1386 = vsub.f32 1.0, %v1385
    %v1387 = vmul.f32 %v1384, %v1386
    %v1388 = vadd.f32 %v1384, %v1387
    %vm1389 = vweird.f32 %v1362
    %vm1390 = vweird.f32 %v1384
    %vm1391 = vmor %vm1389, %vm1390
    %v1392 = vsel %vm1391, %v1384, %v1388
    %v1393 = vand.u32 2147483647, %v1362
    %vm1394 = vcmp.eq.f32.partialorder %v1393, 8.507059e+37
    %v1395 = vand.u32 %v1362, 2147483648
    %v1396 = vor.u32 1.1754944e-38, %v1395
    %v1397 = vsel %vm1394, %v1396, %v1392
    %v1398 = vmul.f32 %v1345, %v1397
    %v1399 = vrcp.pop %v1365
    %v1400 = vmul.f32 %v1365, %v1399
    %v1401 = vsub.f32 1.0, %v1400
    %v1402 = vmul.f32 %v1399, %v1401
    %v1403 = vadd.f32 %v1399, %v1402
    %vm1404 = vweird.f32 %v1365
    %vm1405 = vweird.f32 %v1399
    %vm1406 = vmor %vm1404, %vm1405
    %v1407 = vsel %vm1406, %v1399, %v1403
    %v1408 = vand.u32 2147483647, %v1365
    %vm1409 = vcmp.eq.f32.partialorder %v1408, 8.507059e+37
    %v1410 = vand.u32 %v1365, 2147483648
    %v1411 = vor.u32 1.1754944e-38, %v1410
    %v1412 = vsel %vm1409, %v1411, %v1407
    %v1413 = vmul.f32 %v1347, %v1412
    %v1414 = vrcp.pop %v1368
    %v1415 = vmul.f32 %v1368, %v1414
    %v1416 = vsub.f32 1.0, %v1415
    %v1417 = vmul.f32 %v1414, %v1416
    %v1418 = vadd.f32 %v1414, %v1417
    %vm1419 = vweird.f32 %v1368
    %vm1420 = vweird.f32 %v1414
    %vm1421 = vmor %vm1419, %vm1420
    %v1422 = vsel %vm1421, %v1414, %v1418
    %v1423 = vand.u32 2147483647, %v1368
    %vm1424 = vcmp.eq.f32.partialorder %v1423, 8.507059e+37
    %v1425 = vand.u32 %v1368, 2147483648
    %v1426 = vor.u32 1.1754944e-38, %v1425
    %v1427 = vsel %vm1424, %v1426, %v1422
    %v1428 = vmul.f32 %v1349, %v1427
    %v1429 = vrcp.pop %v1371
    %v1430 = vmul.f32 %v1371, %v1429
    %v1431 = vsub.f32 1.0, %v1430
    %v1432 = vmul.f32 %v1429, %v1431
    %v1433 = vadd.f32 %v1429, %v1432
    %vm1434 = vweird.f32 %v1371
    %vm1435 = vweird.f32 %v1429
    %vm1436 = vmor %vm1434, %vm1435
    %v1437 = vsel %vm1436, %v1429, %v1433
    %v1438 = vand.u32 2147483647, %v1371
    %vm1439 = vcmp.eq.f32.partialorder %v1438, 8.507059e+37
    %v1440 = vand.u32 %v1371, 2147483648
    %v1441 = vor.u32 1.1754944e-38, %v1440
    %v1442 = vsel %vm1439, %v1441, %v1437
    %v1443 = vmul.f32 %v1351, %v1442
    %v1444 = vrcp.pop %v1374
    %v1445 = vmul.f32 %v1374, %v1444
    %v1446 = vsub.f32 1.0, %v1445
    %v1447 = vmul.f32 %v1444, %v1446
    %v1448 = vadd.f32 %v1444, %v1447
    %vm1449 = vweird.f32 %v1374
    %vm1450 = vweird.f32 %v1444
    %vm1451 = vmor %vm1449, %vm1450
    %v1452 = vsel %vm1451, %v1444, %v1448
    %v1453 = vand.u32 2147483647, %v1374
    %vm1454 = vcmp.eq.f32.partialorder %v1453, 8.507059e+37
    %v1455 = vand.u32 %v1374, 2147483648
    %v1456 = vor.u32 1.1754944e-38, %v1455
    %v1457 = vsel %vm1454, %v1456, %v1452
    %v1458 = vmul.f32 %v1353, %v1457
    %v1459 = vrcp.pop %v1377
    %v1460 = vmul.f32 %v1377, %v1459
    %v1461 = vsub.f32 1.0, %v1460
    %v1462 = vmul.f32 %v1459, %v1461
    %v1463 = vadd.f32 %v1459, %v1462
    %vm1464 = vweird.f32 %v1377
    %vm1465 = vweird.f32 %v1459
    %vm1466 = vmor %vm1464, %vm1465
    %v1467 = vsel %vm1466, %v1459, %v1463
    %v1468 = vand.u32 2147483647, %v1377
    %vm1469 = vcmp.eq.f32.partialorder %v1468, 8.507059e+37
    %v1470 = vand.u32 %v1377, 2147483648
    %v1471 = vor.u32 1.1754944e-38, %v1470
    %v1472 = vsel %vm1469, %v1471, %v1467
    %v1473 = vmul.f32 %v1355, %v1472
    %v1474 = vrcp.pop %v1380
    %v1475 = vmul.f32 %v1380, %v1474
    %v1476 = vsub.f32 1.0, %v1475
    %v1477 = vmul.f32 %v1474, %v1476
    %v1478 = vadd.f32 %v1474, %v1477
    %vm1479 = vweird.f32 %v1380
    %vm1480 = vweird.f32 %v1474
    %vm1481 = vmor %vm1479, %vm1480
    %v1482 = vsel %vm1481, %v1474, %v1478
    %v1483 = vand.u32 2147483647, %v1380
    %vm1484 = vcmp.eq.f32.partialorder %v1483, 8.507059e+37
    %v1485 = vand.u32 %v1380, 2147483648
    %v1486 = vor.u32 1.1754944e-38, %v1485
    %v1487 = vsel %vm1484, %v1486, %v1482
    %v1488 = vmul.f32 %v1357, %v1487
    %v1489 = vrcp.pop %v1383
    %v1490 = vmul.f32 %v1383, %v1489
    %v1491 = vsub.f32 1.0, %v1490
    %v1492 = vmul.f32 %v1489, %v1491
    %v1493 = vadd.f32 %v1489, %v1492
    %vm1494 = vweird.f32 %v1383
    %vm1495 = vweird.f32 %v1489
    %vm1496 = vmor %vm1494, %vm1495
    %v1497 = vsel %vm1496, %v1489, %v1493
    %v1498 = vand.u32 2147483647, %v1383
    %vm1499 = vcmp.eq.f32.partialorder %v1498, 8.507059e+37
    %v1500 = vand.u32 %v1383, 2147483648
    %v1501 = vor.u32 1.1754944e-38, %v1500
    %v1502 = vsel %vm1499, %v1501, %v1497
    %v1503 = vmul.f32 %v1359, %v1502
    %v1504 = vpack.c.bf16 %v1398, %v1398
    %v1505 = vpack.c.bf16 %v1413, %v1413
    %v1506 = vpack.c.bf16 %v1428, %v1428
    %v1507 = vpack.c.bf16 %v1443, %v1443
    %v1508 = vpack.c.bf16 %v1458, %v1458
    %v1509 = vpack.c.bf16 %v1473, %v1473
    %v1510 = vpack.c.bf16 %v1488, %v1488
    %v1511 = vpack.c.bf16 %v1503, %v1503
    %1512 = vrot.lane.b32.xlu0 %v1122, 64
    %v1513 = vpop.permute.xlu0 %1512
    %v1515 = vsel %vm184, %v1504, 0
    %v1518 = vsel %vm577, %v1513, 0
    %1520 = vmatpush.bf16.msra.mxu0 0
    %1521 = vmatpush.bf16.msra.mxu0 0
    %1522 = vmatpush.bf16.msra.mxu0 0
    %1523 = vmatpush.bf16.msra.mxu0 0
    %1524 = vmatpush.bf16.msra.mxu0 0
    %1525 = vmatpush.bf16.msra.mxu0 0
    %1526 = vmatpush.bf16.msra.mxu0 0
    %1527 = vmatpush.bf16.msra.mxu0 %v1518
    %1528 = vmatmul.bf16.gmra.mxu0 %v1515
    %v1529 = vpop.f32.mrf.mxu0
    %v1530 = vadd.f32 0.0, %v1529
    %v1531 = vpop.f32.mrf.mxu0
    %1532 = vdwg.mxu0
    %1533 = vrot.lane.b32.xlu0 %v1146, 64
    %v1534 = vpop.permute.xlu0 %1533
    %v1536 = vsel %vm184, %v1505, 0
    %v1539 = vsel %vm577, %v1534, 0
    %1541 = vmatpush.bf16.msra.mxu0 0
    %1542 = vmatpush.bf16.msra.mxu0 0
    %1543 = vmatpush.bf16.msra.mxu0 0
    %1544 = vmatpush.bf16.msra.mxu0 0
    %1545 = vmatpush.bf16.msra.mxu0 0
    %1546 = vmatpush.bf16.msra.mxu0 0
    %1547 = vmatpush.bf16.msra.mxu0 0
    %1548 = vmatpush.bf16.msra.mxu0 %v1539
    %1549 = vmatmul.bf16.gmra.mxu0 %v1536
    %v1550 = vpop.f32.mrf.mxu0
    %v1551 = vadd.f32 0.0, %v1550
    %v1552 = vpop.f32.mrf.mxu0
    %1553 = vdwg.mxu0
    %1554 = vrot.lane.b32.xlu0 %v1170, 64
    %v1555 = vpop.permute.xlu0 %1554
    %v1557 = vsel %vm184, %v1506, 0
    %v1560 = vsel %vm577, %v1555, 0
    %1562 = vmatpush.bf16.msra.mxu0 0
    %1563 = vmatpush.bf16.msra.mxu0 0
    %1564 = vmatpush.bf16.msra.mxu0 0
    %1565 = vmatpush.bf16.msra.mxu0 0
    %1566 = vmatpush.bf16.msra.mxu0 0
    %1567 = vmatpush.bf16.msra.mxu0 0
    %1568 = vmatpush.bf16.msra.mxu0 0
    %1569 = vmatpush.bf16.msra.mxu0 %v1560
    %1570 = vmatmul.bf16.gmra.mxu0 %v1557
    %v1571 = vpop.f32.mrf.mxu0
    %v1572 = vadd.f32 0.0, %v1571
    %v1573 = vpop.f32.mrf.mxu0
    %1574 = vdwg.mxu0
    %1575 = vrot.lane.b32.xlu0 %v1194, 64
    %v1576 = vpop.permute.xlu0 %1575
    %v1578 = vsel %vm184, %v1507, 0
    %v1581 = vsel %vm577, %v1576, 0
    %1583 = vmatpush.bf16.msra.mxu0 0
    %1584 = vmatpush.bf16.msra.mxu0 0
    %1585 = vmatpush.bf16.msra.mxu0 0
    %1586 = vmatpush.bf16.msra.mxu0 0
    %1587 = vmatpush.bf16.msra.mxu0 0
    %1588 = vmatpush.bf16.msra.mxu0 0
    %1589 = vmatpush.bf16.msra.mxu0 0
    %1590 = vmatpush.bf16.msra.mxu0 %v1581
    %1591 = vmatmul.bf16.gmra.mxu0 %v1578
    %v1592 = vpop.f32.mrf.mxu0
    %v1593 = vadd.f32 0.0, %v1592
    %v1594 = vpop.f32.mrf.mxu0
    %1595 = vdwg.mxu0
    %1596 = vrot.lane.b32.xlu0 %v1218, 64
    %v1597 = vpop.permute.xlu0 %1596
    %v1599 = vsel %vm184, %v1508, 0
    %v1602 = vsel %vm577, %v1597, 0
    %1604 = vmatpush.bf16.msra.mxu0 0
    %1605 = vmatpush.bf16.msra.mxu0 0
    %1606 = vmatpush.bf16.msra.mxu0 0
    %1607 = vmatpush.bf16.msra.mxu0 0
    %1608 = vmatpush.bf16.msra.mxu0 0
    %1609 = vmatpush.bf16.msra.mxu0 0
    %1610 = vmatpush.bf16.msra.mxu0 0
    %1611 = vmatpush.bf16.msra.mxu0 %v1602
    %1612 = vmatmul.bf16.gmra.mxu0 %v1599
    %v1613 = vpop.f32.mrf.mxu0
    %v1614 = vadd.f32 0.0, %v1613
    %v1615 = vpop.f32.mrf.mxu0
    %1616 = vdwg.mxu0
    %1617 = vrot.lane.b32.xlu0 %v1242, 64
    %v1618 = vpop.permute.xlu0 %1617
    %v1620 = vsel %vm184, %v1509, 0
    %v1623 = vsel %vm577, %v1618, 0
    %1625 = vmatpush.bf16.msra.mxu0 0
    %1626 = vmatpush.bf16.msra.mxu0 0
    %1627 = vmatpush.bf16.msra.mxu0 0
    %1628 = vmatpush.bf16.msra.mxu0 0
    %1629 = vmatpush.bf16.msra.mxu0 0
    %1630 = vmatpush.bf16.msra.mxu0 0
    %1631 = vmatpush.bf16.msra.mxu0 0
    %1632 = vmatpush.bf16.msra.mxu0 %v1623
    %1633 = vmatmul.bf16.gmra.mxu0 %v1620
    %v1634 = vpop.f32.mrf.mxu0
    %v1635 = vadd.f32 0.0, %v1634
    %v1636 = vpop.f32.mrf.mxu0
    %1637 = vdwg.mxu0
    %1638 = vrot.lane.b32.xlu0 %v1266, 64
    %v1639 = vpop.permute.xlu0 %1638
    %v1641 = vsel %vm184, %v1510, 0
    %v1644 = vsel %vm577, %v1639, 0
    %1646 = vmatpush.bf16.msra.mxu0 0
    %1647 = vmatpush.bf16.msra.mxu0 0
    %1648 = vmatpush.bf16.msra.mxu0 0
    %1649 = vmatpush.bf16.msra.mxu0 0
    %1650 = vmatpush.bf16.msra.mxu0 0
    %1651 = vmatpush.bf16.msra.mxu0 0
    %1652 = vmatpush.bf16.msra.mxu0 0
    %1653 = vmatpush.bf16.msra.mxu0 %v1644
    %1654 = vmatmul.bf16.gmra.mxu0 %v1641
    %v1655 = vpop.f32.mrf.mxu0
    %v1656 = vadd.f32 0.0, %v1655
    %v1657 = vpop.f32.mrf.mxu0
    %1658 = vdwg.mxu0
    %1659 = vrot.lane.b32.xlu0 %v1290, 64
    %v1660 = vpop.permute.xlu0 %1659
    %v1662 = vsel %vm184, %v1511, 0
    %v1665 = vsel %vm577, %v1660, 0
    %1667 = vmatpush.bf16.msra.mxu0 0
    %1668 = vmatpush.bf16.msra.mxu0 0
    %1669 = vmatpush.bf16.msra.mxu0 0
    %1670 = vmatpush.bf16.msra.mxu0 0
    %1671 = vmatpush.bf16.msra.mxu0 0
    %1672 = vmatpush.bf16.msra.mxu0 0
    %1673 = vmatpush.bf16.msra.mxu0 0
    %1674 = vmatpush.bf16.msra.mxu0 %v1665
    %1675 = vmatmul.bf16.gmra.mxu0 %v1662
    %v1676 = vpop.f32.mrf.mxu0
    %v1677 = vadd.f32 0.0, %v1676
    %v1678 = vpop.f32.mrf.mxu0
    %1679 = vdwg.mxu0
    %1682 = vrot.lane.b32.xlu0 %v1572, 8
    %v1683 = vpop.permute.xlu0 %1682
    %1684 = vrot.lane.b32.xlu0 %v1593, 8
    %v1685 = vpop.permute.xlu0 %1684
    %1690 = vrot.lane.b32.xlu0 %v1614, 16
    %v1691 = vpop.permute.xlu0 %1690
    %1692 = vrot.lane.b32.xlu0 %v1635, 16
    %v1693 = vpop.permute.xlu0 %1692
    %1698 = vrot.lane.b32.xlu0 %v1656, 24
    %v1699 = vpop.permute.xlu0 %1698
    %1700 = vrot.lane.b32.xlu0 %v1677, 24
    %v1701 = vpop.permute.xlu0 %1700
    %v1704 = vsel %vm184, %v1530, %v1683
    %v1705 = vsel %vm184, %v1551, %v1685
    %v1706 = vsel %vm767, %v1704, %v1691
    %v1707 = vsel %vm767, %v1705, %v1693
    %v1708 = vsel %vm770, %v1706, %v1699
    %v1709 = vsel %vm770, %v1707, %v1701
    %v1710 = vpack.c.bf16 %v1709, %v1708
    %v1715 = vunpack.c.l.b16 %v979
    %v1716 = vunpack.c.l.b16 %v980
    %v1717 = vunpack.c.l.b16 %v981
    %v1718 = vunpack.c.l.b16 %v982
    %v1719 = vpack.c.b16 %v1716, %v1715
    %v1720 = vpack.c.b16 %v1718, %v1717
    %v1724 = vsel %vm62, %v1710, 0
    %1726 = vmatpush.bf16.msra.mxu0 0
    %1727 = vmatpush.bf16.msra.mxu0 0
    %1728 = vmatpush.bf16.msra.mxu0 0
    %1729 = vmatpush.bf16.msra.mxu0 0
    %1730 = vmatpush.bf16.msra.mxu0 0
    %1731 = vmatpush.bf16.msra.mxu0 0
    %1732 = vmatpush.bf16.msra.mxu0 %v1720
    %1733 = vmatpush.bf16.msra.mxu0 %v1719
    %1734 = vmatmul.bf16.gmra.mxu0 %v1724
    %v1735 = vpop.f32.mrf.mxu0
    %v1736 = vadd.f32 0.0, %v1735
    %v1737 = vpop.f32.mrf.mxu0
    %v1738 = vadd.f32 0.0, %v1737
    %1739 = vdwg.mxu0
    %v1740 = vadd.f32 %v973, %v1736
    %v1741 = vadd.f32 %v974, %v1738
    %v1742 = vperm.slane %v1006, 0
    %v1743 = vadd.f32 %v1740, %v1742
    %v1744 = vadd.f32 %v1741, %v1742
    %v1745 = vsel %vm62, %v1743, 0.0
    %1746 = vadd.xlane.f32.xlu0 %v1745
    %v1747 = vpop.xlane.xlu0 %1746
    %v1748 = vsel %vm62, %v1744, 0.0
    %1749 = vadd.xlane.f32.xlu0 %v1748
    %v1750 = vpop.xlane.xlu0 %1749
    %v1751 = vmul.f32 %v1747, %v75
    %v1752 = vmul.f32 %v1750, %v75
    %v1753 = vsub.f32 %v1743, %v1751
    %v1754 = vsub.f32 %v1744, %v1752
    %v1755 = vmul.f32 %v1753, %v1753
    %v1756 = vmul.f32 %v1754, %v1754
    %v1757 = vsel %vm62, %v1755, 0.0
    %1758 = vadd.xlane.f32.xlu0 %v1757
    %v1759 = vpop.xlane.xlu0 %1758
    %v1760 = vsel %vm62, %v1756, 0.0
    %1761 = vadd.xlane.f32.xlu0 %v1760
    %v1762 = vpop.xlane.xlu0 %1761
    %v1763 = vmul.f32 %v1759, %v75
    %v1764 = vmul.f32 %v1762, %v75
    %v1765 = vadd.f32 %v1763, 1e-05
    %v1766 = vadd.f32 %v1764, 1e-05
    %v1767 = vrsqrt.pop %v1765
    %v1768 = vmul.f32 %v1767, %v1765
    %v1769 = vmul.f32 %v1768, %v1767
    %v1770 = vmul.f32 0.5, %v1769
    %v1771 = vsub.f32 1.5, %v1770
    %v1772 = vmul.f32 %v1767, %v1771
    %vm1773 = vweird.f32 %v1765
    %vm1774 = vweird.f32 %v1767
    %vm1775 = vmor %vm1773, %vm1774
    %v1776 = vsel %vm1775, %v1767, %v1772
    %v1777 = vrsqrt.pop %v1766
    %v1778 = vmul.f32 %v1777, %v1766
    %v1779 = vmul.f32 %v1778, %v1777
    %v1780 = vmul.f32 0.5, %v1779
    %v1781 = vsub.f32 1.5, %v1780
    %v1782 = vmul.f32 %v1777, %v1781
    %vm1783 = vweird.f32 %v1766
    %vm1784 = vweird.f32 %v1777
    %vm1785 = vmor %vm1783, %vm1784
    %v1786 = vsel %vm1785, %v1777, %v1782
    %v1787 = vmul.f32 %v1753, %v1776
    %v1788 = vmul.f32 %v1754, %v1786
    %v1789 = vperm.slane %v1007, 0
    %v1790 = vmul.f32 %v1787, %v1789
    %v1791 = vmul.f32 %v1788, %v1789
    %v1792 = vperm.slane %v1008, 0
    %v1793 = vadd.f32 %v1790, %v1792
    %v1794 = vadd.f32 %v1791, %v1792
    %v1795 = vpack.c.bf16 %v1794, %v1793
    %v1796 = vperm.slane %v1009, 0
    %v1801 = vunpack.c.l.b16 %v983
    %v1802 = vunpack.c.l.b16 %v984
    %v1803 = vunpack.c.l.b16 %v985
    %v1804 = vunpack.c.l.b16 %v986
    %v1805 = vpack.c.b16 %v1802, %v1801
    %v1806 = vpack.c.b16 %v1804, %v1803
    %v1810 = vsel %vm62, %v1795, 0
    %1812 = vmatpush.bf16.msra.mxu0 0
    %1813 = vmatpush.bf16.msra.mxu0 0
    %1814 = vmatpush.bf16.msra.mxu0 0
    %1815 = vmatpush.bf16.msra.mxu0 0
    %1816 = vmatpush.bf16.msra.mxu0 0
    %1817 = vmatpush.bf16.msra.mxu0 0
    %1818 = vmatpush.bf16.msra.mxu0 %v1806
    %1819 = vmatpush.bf16.msra.mxu0 %v1805
    %1820 = vmatmul.bf16.gmra.mxu0 %v1810
    %v1821 = vpop.f32.mrf.mxu0
    %v1822 = vadd.f32 %v1796, %v1821
    %v1823 = vpop.f32.mrf.mxu0
    %v1824 = vadd.f32 %v1796, %v1823
    %1825 = vdwg.mxu0
    %v1826 = vmul.f32 %v1822, 0.5
    %v1827 = vmul.f32 %v1824, 0.5
    %v1828 = vmul.f32 %v1822, %v1822
    %v1829 = vmul.f32 %v1824, %v1824
    %v1830 = vmul.f32 %v1828, %v1822
    %v1831 = vmul.f32 %v1829, %v1824
    %v1832 = vmul.f32 %v1830, 0.044715
    %v1833 = vmul.f32 %v1831, 0.044715
    %v1834 = vadd.f32 %v1822, %v1832
    %v1835 = vadd.f32 %v1824, %v1833
    %v1836 = vmul.f32 %v1834, 0.7978846
    %v1837 = vmul.f32 %v1835, 0.7978846
    %v1838 = vtanh.pop %v1836
    %v1839 = vtanh.pop %v1837
    %v1840 = vadd.f32 %v1838, 1.0
    %v1841 = vadd.f32 %v1839, 1.0
    %v1842 = vmul.f32 %v1826, %v1840
    %v1843 = vmul.f32 %v1827, %v1841
    %v1844 = vpack.c.bf16 %v1843, %v1842
    %v1861 = vunpack.c.l.b16 %v987
    %v1862 = vunpack.c.l.b16 %v988
    %v1863 = vunpack.c.l.b16 %v989
    %v1864 = vunpack.c.l.b16 %v990
    %v1865 = vunpack.c.l.b16 %v991
    %v1866 = vunpack.c.l.b16 %v992
    %v1867 = vunpack.c.l.b16 %v993
    %v1868 = vunpack.c.l.b16 %v994
    %v1869 = vunpack.c.l.b16 %v995
    %v1870 = vunpack.c.l.b16 %v996
    %v1871 = vunpack.c.l.b16 %v997
    %v1872 = vunpack.c.l.b16 %v998
    %v1873 = vunpack.c.l.b16 %v999
    %v1874 = vunpack.c.l.b16 %v1000
    %v1875 = vunpack.c.l.b16 %v1001
    %v1876 = vunpack.c.l.b16 %v1002
    %v1877 = vpack.c.b16 %v1862, %v1861
    %v1878 = vpack.c.b16 %v1864, %v1863
    %v1879 = vpack.c.b16 %v1866, %v1865
    %v1880 = vpack.c.b16 %v1868, %v1867
    %v1881 = vpack.c.b16 %v1870, %v1869
    %v1882 = vpack.c.b16 %v1872, %v1871
    %v1883 = vpack.c.b16 %v1874, %v1873
    %v1884 = vpack.c.b16 %v1876, %v1875
    %1893 = vmatpush.bf16.msra.mxu0 %v1884
    %1894 = vmatpush.bf16.msra.mxu0 %v1883
    %1895 = vmatpush.bf16.msra.mxu0 %v1882
    %1896 = vmatpush.bf16.msra.mxu0 %v1881
    %1897 = vmatpush.bf16.msra.mxu0 %v1880
    %1898 = vmatpush.bf16.msra.mxu0 %v1879
    %1899 = vmatpush.bf16.msra.mxu0 %v1878
    %1900 = vmatpush.bf16.msra.mxu0 %v1877
    %1901 = vmatmul.bf16.gmra.mxu0 %v1844
    %v1902 = vpop.f32.mrf.mxu0
    %v1903 = vadd.f32 0.0, %v1902
    %v1904 = vpop.f32.mrf.mxu0
    %v1905 = vadd.f32 0.0, %v1904
    %1906 = vdwg.mxu0
    %v1907 = vadd.f32 %v1743, %v1903
    %v1908 = vadd.f32 %v1744, %v1905
    %v1909 = vperm.slane %v1010, 0
    %v1910 = vadd.f32 %v1907, %v1909
    %v1911 = vadd.f32 %v1908, %v1909
    %v1912 = vld [vmem:[%s2 + $0x10] sm:$0x1]
    %v1913 = vld [vmem:[%s2 + $0x11] sm:$0x1]
    %v1914 = vsel %vm62, %v1910, 0.0
    %1915 = vadd.xlane.f32.xlu0 %v1914
    %v1916 = vpop.xlane.xlu0 %1915
    %v1917 = vsel %vm62, %v1911, 0.0
    %1918 = vadd.xlane.f32.xlu0 %v1917
    %v1919 = vpop.xlane.xlu0 %1918
    %v1920 = vmul.f32 %v1916, %v75
    %v1921 = vmul.f32 %v1919, %v75
    %v1922 = vsub.f32 %v1910, %v1920
    %v1923 = vsub.f32 %v1911, %v1921
    %v1924 = vmul.f32 %v1922, %v1922
    %v1925 = vmul.f32 %v1923, %v1923
    %v1926 = vsel %vm62, %v1924, 0.0
    %1927 = vadd.xlane.f32.xlu0 %v1926
    %v1928 = vpop.xlane.xlu0 %1927
    %v1929 = vsel %vm62, %v1925, 0.0
    %1930 = vadd.xlane.f32.xlu0 %v1929
    %v1931 = vpop.xlane.xlu0 %1930
    %v1932 = vmul.f32 %v1928, %v75
    %v1933 = vmul.f32 %v1931, %v75
    %v1934 = vadd.f32 %v1932, 1e-05
    %v1935 = vadd.f32 %v1933, 1e-05
    %v1936 = vrsqrt.pop %v1934
    %v1937 = vmul.f32 %v1936, %v1934
    %v1938 = vmul.f32 %v1937, %v1936
    %v1939 = vmul.f32 0.5, %v1938
    %v1940 = vsub.f32 1.5, %v1939
    %v1941 = vmul.f32 %v1936, %v1940
    %vm1942 = vweird.f32 %v1934
    %vm1943 = vweird.f32 %v1936
    %vm1944 = vmor %vm1942, %vm1943
    %v1945 = vsel %vm1944, %v1936, %v1941
    %v1946 = vrsqrt.pop %v1935
    %v1947 = vmul.f32 %v1946, %v1935
    %v1948 = vmul.f32 %v1947, %v1946
    %v1949 = vmul.f32 0.5, %v1948
    %v1950 = vsub.f32 1.5, %v1949
    %v1951 = vmul.f32 %v1946, %v1950
    %vm1952 = vweird.f32 %v1935
    %vm1953 = vweird.f32 %v1946
    %vm1954 = vmor %vm1952, %vm1953
    %v1955 = vsel %vm1954, %v1946, %v1951
    %v1956 = vmul.f32 %v1922, %v1945
    %v1957 = vmul.f32 %v1923, %v1955
    %v1958 = vperm.slane %v1912, 0
    %v1959 = vmul.f32 %v1956, %v1958
    %v1960 = vmul.f32 %v1957, %v1958
    %v1961 = vperm.slane %v1913, 0
    %v1962 = vadd.f32 %v1959, %v1961
    %v1963 = vadd.f32 %v1960, %v1961
    %v1964 = vld [vmem:[%s1 + $0xe0] sm:$0xf]
    %v1965 = vld [vmem:[%s1 + $0xe4] sm:$0xf]
    %v1966 = vld [vmem:[%s1 + $0xe8] sm:$0xf]
    %v1967 = vld [vmem:[%s1 + $0xec] sm:$0xf]
    %v1968 = vpack.c.bf16 %v1963, %v1962
    %v1973 = vunpack.c.l.b16 %v1964
    %v1974 = vunpack.c.l.b16 %v1965
    %v1975 = vunpack.c.l.b16 %v1966
    %v1976 = vunpack.c.l.b16 %v1967
    %v1977 = vpack.c.b16 %v1974, %v1973
    %v1978 = vpack.c.b16 %v1976, %v1975
    %v1982 = vsel %vm62, %v1968, 0
    %1984 = vmatpush.bf16.msra.mxu0 0
    %1985 = vmatpush.bf16.msra.mxu0 0
    %1986 = vmatpush.bf16.msra.mxu0 0
    %1987 = vmatpush.bf16.msra.mxu0 0
    %1988 = vmatpush.bf16.msra.mxu0 0
    %1989 = vmatpush.bf16.msra.mxu0 0
    %1990 = vmatpush.bf16.msra.mxu0 %v1978
    %1991 = vmatpush.bf16.msra.mxu0 %v1977
    %1992 = vmatmul.bf16.gmra.mxu0 %v1982
    %v1993 = vpop.f32.mrf.mxu0
    %v1994 = vadd.f32 0.0, %v1993
    %v1995 = vpop.f32.mrf.mxu0
    %v1996 = vadd.f32 0.0, %v1995
    %1997 = vdwg.mxu0
    %1998 = vst [vmem:[#allocation2] sm:$0xff] %v1994
    %1999 = vst [vmem:[#allocation2 + $0x8] sm:$0xff] %v1996
    %v2000 = vsel %vm62, %v1962, 0.0
    %v2001 = vsel %vm62, %v1963, 0.0
    %2002 = vst [vmem:[%s4] sm:$0xff] %v2000
    %2003 = vst [vmem:[%s4 + $0x8] sm:$0xff] %v2001
    // Predicated region
    $region14: #{gpt_forward.1} parent=1 // pred_check
      _
    $region15: #{gpt_forward.1} parent=1 // pred_check_branch
      %2005 = sbr.rel (0) target = $region17
    $region16: #{gpt_forward.1} parent=1 // pred_region
      %2007 = vsyncadd [#allocation3], 0
      %s2008 = sshll.u32 [#allocation2], 4
      %s2009 = int_to_ptr.vmem [resolvable:$true] %s2008
      %s2010 = sshll.u32 %s3, 4
      %s2011 = int_to_ptr.hbm [resolvable:$true] %s2010
      %2016 = dma.vmem_to_hbm [thread:$0]  %s2009, 256, %s2011, [#allocation3], 128, 128, 8
    $region17: #{gpt_forward.1} parent=1 // pred_fallthru
      _
    // Predicated region
    $region18: #{gpt_forward.1} parent=1 // pred_check
      _
    $region19: #{gpt_forward.1} parent=1 // pred_check_branch
      %2018 = sbr.rel (0) target = $region21
    $region20: #{gpt_forward.1} parent=1 // pred_region
      _
    $region21: #{gpt_forward.1} parent=1 // pred_fallthru
      _
    // Predicated region
    $region22: #{gpt_forward.1} parent=1 // pred_check
      _
    $region23: #{gpt_forward.1} parent=1 // pred_check_branch
      %2020 = sbr.rel (0) target = $region25
    $region24: #{gpt_forward.1} parent=1 // pred_region
      %2022 = dma.done [#allocation3], 256
    $region25: #{gpt_forward.1} parent=1 // pred_fallthru
      _
    // Predicated region
    $region26: #{gpt_forward.1} parent=1 // pred_check
      _
    $region27: #{gpt_forward.1} parent=1 // pred_check_branch
      %2024 = sbr.rel (0) target = $region29
    $region28: #{gpt_forward.1} parent=1 // pred_region
      _
    $region29: #{gpt_forward.1} parent=1 // pred_fallthru
      _
    %2025 = vsyncpa [#allocation3], 1

</llo_original>
